<compile_context>
chip_gen: v5e
topology: v5e:2x2
jax: 0.10.0
libtpu: 0.0.40
codegen_flags: <defaults>
</compile_context>

<pallas_src>
import random

import jax
import jax.numpy as jnp
from jax.experimental import pallas as pl
from jax.experimental.pallas import tpu as pltpu


LANE = 128
SUBLANE = 8
MATMUL_DTYPE = jnp.bfloat16


def _ceil_to(x, m):
    return ((x + m - 1) // m) * m


# ----------------------------------------------------------------------------
# Encoder: one grid point; hoisted input projection + h@W_hh recurrence.
# ----------------------------------------------------------------------------
def encoder_kernel(src2_ref, wih_ref, whh_ref, bih_ref, bhh_ref,
                   enc_out_ref, hfin_ref, gi_scr):
    src_len, bp, hp = enc_out_ref.shape
    b_hh = bhh_ref[...]

    # Hoisted input projection: whole source sequence in one MXU matmul.
    gi_scr[...] = (jnp.dot(src2_ref[...], wih_ref[...],
                           preferred_element_type=jnp.float32)
                   + bih_ref[...])                               # [S*bp, 3HP]

    def step(t, h):
        row = pl.multiple_of(t * bp, bp)
        gi = gi_scr[pl.ds(row, bp), :]                           # [bp, 3HP]
        gh = (jnp.dot(h.astype(whh_ref.dtype), whh_ref[...],
                      preferred_element_type=jnp.float32) + b_hh)
        i_r, i_z, i_n = gi[:, :hp], gi[:, hp:2 * hp], gi[:, 2 * hp:]
        h_r, h_z, h_n = gh[:, :hp], gh[:, hp:2 * hp], gh[:, 2 * hp:]
        r = jax.nn.sigmoid(i_r + h_r)
        z = jax.nn.sigmoid(i_z + h_z)
        n = jnp.tanh(i_n + r * h_n)                # exact PyTorch GRU semantics
        h_new = (1.0 - z) * n + z * h
        enc_out_ref[t] = h_new
        return h_new

    h0 = jnp.zeros((bp, hp), jnp.float32)
    # Bounded unroll: full at toy sizes, capped at 8 for long sequences.
    h_final = jax.lax.fori_loop(0, src_len, step, h0,
                                unroll=min(int(src_len), 8))
    hfin_ref[...] = h_final


def run_encoder(src_emb2, enc_p, src_len, bp):
    ep = src_emb2.shape[1]
    hp = enc_p["w_hh"].shape[0]
    return pl.pallas_call(
        encoder_kernel,
        out_shape=(jax.ShapeDtypeStruct((src_len, bp, hp), jnp.float32),
                   jax.ShapeDtypeStruct((bp, hp), jnp.float32)),
        grid_spec=pltpu.PrefetchScalarGridSpec(
            num_scalar_prefetch=0,
            grid=(1,),
            in_specs=[
                pl.BlockSpec((src_len * bp, ep), lambda i: (0, 0)),
                pl.BlockSpec((ep, 3 * hp), lambda i: (0, 0)),
                pl.BlockSpec((hp, 3 * hp), lambda i: (0, 0)),
                pl.BlockSpec((1, 3 * hp), lambda i: (0, 0)),
                pl.BlockSpec((1, 3 * hp), lambda i: (0, 0)),
            ],
            out_specs=[
                pl.BlockSpec((src_len, bp, hp), lambda i: (0, 0, 0)),
                pl.BlockSpec((bp, hp), lambda i: (0, 0)),
            ],
            scratch_shapes=[pltpu.VMEM((src_len * bp, 3 * hp), jnp.float32)],
        ),
        compiler_params=pltpu.CompilerParams(
            dimension_semantics=("arbitrary",)),
    )(src_emb2, enc_p["w_ih"], enc_p["w_hh"], enc_p["b_ih"], enc_p["b_hh"])


# ----------------------------------------------------------------------------
# Decoder: the ENTIRE teacher-forcing time loop fused into one grid point.
# Hidden state + previous-argmax one-hot are fori_loop carries; the selected
# GRU input projection goes through a small VMEM scratch so the generated-path
# matmul is skipped on teacher-forced steps.
# ----------------------------------------------------------------------------
def make_decoder_kernel(vocab_real):
    def decoder_kernel(tf_ref, trg2_ref, h0_ref, enc_ref, ew_ref,
                       wih_ref, whh_ref, bih_ref, bhh_ref,
                       wa_ref, wc1_ref, wc2_ref, bc_ref, wout_ref, bout_ref,
                       logits_ref, gi_tf_scr, gi_scr):
        steps, bp, vp = logits_ref.shape
        hp = h0_ref.shape[-1]

        # Hoisted small constants (biases, iota, enc) — weights are read at the
        # matmul site to keep vreg pressure low.
        b_ih = bih_ref[...]
        b_hh = bhh_ref[...]
        b_c = bc_ref[...]
        b_out = bout_ref[...]
        enc = enc_ref[...]                                   # [S, bp, HP] f32
        col = jax.lax.broadcasted_iota(jnp.int32, (bp, vp), 1)

        # Hoisted: pre-project ALL teacher-forced embeddings in one matmul.
        gi_tf_scr[...] = (jnp.dot(trg2_ref[...], wih_ref[...],
                                  preferred_element_type=jnp.float32)
                          + b_ih)                            # [steps*bp, 3HP]

        def step(t, carry):
            h, onehot = carry
            tf = tf_ref[t]

            @pl.when(tf != 0)
            def _():
                row = pl.multiple_of(t * bp, bp)
                gi_scr[...] = gi_tf_scr[pl.ds(row, bp), :]

            @pl.when(tf == 0)
            def _():
                # Generated-token path only when NOT teacher forcing; the
                # embedding table is pre-folded into W_ih (EW = emb @ W_ih).
                gi_scr[...] = (jnp.dot(onehot.astype(ew_ref.dtype), ew_ref[...],
                                       preferred_element_type=jnp.float32)
                               + b_ih)

            gi = gi_scr[...]                                 # [bp, 3HP]
            gh = (jnp.dot(h.astype(whh_ref.dtype), whh_ref[...],
                          preferred_element_type=jnp.float32) + b_hh)
            i_r, i_z, i_n = gi[:, :hp], gi[:, hp:2 * hp], gi[:, 2 * hp:]
            h_r, h_z, h_n = gh[:, :hp], gh[:, hp:2 * hp], gh[:, 2 * hp:]
            r = jax.nn.sigmoid(i_r + h_r)
            z = jax.nn.sigmoid(i_z + h_z)
            n = jnp.tanh(i_n + r * h_n)
            h_new = (1.0 - z) * n + z * h                    # [bp, HP] f32

            # Luong "general" attention on the VPU/XLU over time-major enc —
            # no inter-kernel transpose, no 1-row MXU pushes.
            q = jnp.dot(h_new.astype(wa_ref.dtype), wa_ref[...],
                        preferred_element_type=jnp.float32)  # [bp, HP]
            scores = jnp.sum(q[None, :, :] * enc, axis=-1)   # [S, bp]
            mx = jnp.max(scores, axis=0, keepdims=True)
            e = jnp.exp(scores - mx)
            attn = e / jnp.sum(e, axis=0, keepdims=True)     # softmax over S
            ctx = jnp.sum(attn[:, :, None] * enc, axis=0)    # [bp, HP]

            combined = jnp.tanh(
                jnp.dot(h_new.astype(wc1_ref.dtype), wc1_ref[...],
                        preferred_element_type=jnp.float32)
                + jnp.dot(ctx.astype(wc2_ref.dtype), wc2_ref[...],
                          preferred_element_type=jnp.float32)
                + b_c)
            logits = (jnp.dot(combined.astype(wout_ref.dtype), wout_ref[...],
                              preferred_element_type=jnp.float32)
                      + b_out)                               # [bp, VP] f32
            logits_ref[t] = logits

            # Argmax over the REAL vocab (padded cols masked) -> one-hot input
            # for the next step.  First-max tie-break matches torch.argmax.
            masked = jnp.where(col < vocab_real, logits, jnp.float32(-1e30))
            row_max = jnp.max(masked, axis=-1, keepdims=True)
            first_max = jnp.min(jnp.where(masked == row_max, col, vp),
                                axis=-1, keepdims=True)      # [bp, 1]
            onehot_new = (col == first_max).astype(jnp.float32)
            return (h_new, onehot_new)

        h0 = h0_ref[...]
        onehot0 = jnp.zeros((bp, vp), jnp.float32)
        jax.lax.fori_loop(0, steps, step, (h0, onehot0))

    return decoder_kernel


def run_decoder(tf_flags, trg_emb2, h0, enc_tm, dec_p, vocab_real, steps, bp):
    ep = trg_emb2.shape[1]
    hp = h0.shape[-1]
    src_len = enc_tm.shape[0]
    vp = dec_p["w_out"].shape[-1]
    vrows = dec_p["ew"].shape[0]

    c2 = lambda r, c: pl.BlockSpec((r, c), lambda i, tf: (0, 0))
    c3 = lambda a, b, c: pl.BlockSpec((a, b, c), lambda i, tf: (0, 0, 0))

    return pl.pallas_call(
        make_decoder_kernel(vocab_real),
        out_shape=jax.ShapeDtypeStruct((steps, bp, vp), jnp.float32),
        grid_spec=pltpu.PrefetchScalarGridSpec(
            num_scalar_prefetch=1,
            grid=(1,),
            in_specs=[
                c2(steps * bp, ep),           # teacher-forced embeddings (flat)
                c2(bp, hp),                   # h0 (encoder final hidden)
                c3(src_len, bp, hp),          # enc output, time-major
                c2(vrows, 3 * hp),            # EW = emb @ W_ih (folded)
                c2(ep, 3 * hp),               # W_ih
                c2(hp, 3 * hp),               # W_hh
                c2(1, 3 * hp), c2(1, 3 * hp),  # b_ih, b_hh
                c2(hp, hp), c2(hp, hp), c2(hp, hp),   # W_attn, W_c1, W_c2
                c2(1, hp), c2(hp, vp), c2(1, vp),     # b_c, W_out, b_out
            ],
            out_specs=c3(steps, bp, vp),
            scratch_shapes=[
                pltpu.VMEM((steps * bp, 3 * hp), jnp.float32),  # gi (tf path)
                pltpu.VMEM((bp, 3 * hp), jnp.float32),          # gi selected
            ],
        ),
        compiler_params=pltpu.CompilerParams(
            dimension_semantics=("arbitrary",)),
    )(tf_flags, trg_emb2, h0, enc_tm,
      dec_p["ew"], dec_p["w_ih"], dec_p["w_hh"],
      dec_p["b_ih"], dec_p["b_hh"], dec_p["w_attn"],
      dec_p["w_c1"], dec_p["w_c2"], dec_p["b_c"],
      dec_p["w_out"], dec_p["b_out"])


# ----------------------------------------------------------------------------
# Parameter padding to lane-dense (8,128)-aligned shapes, bf16 matmul weights.
# ----------------------------------------------------------------------------
def _pad2(x, rows, cols):
    return jnp.pad(x, ((0, rows - x.shape[0]), (0, cols - x.shape[1])))


def _pad_gru_gates(w, hid, hid_pad):
    """[in, 3*hid] -> [in, 3*hid_pad]: zero-pad each r/z/n gate segment."""
    segs = [w[:, g * hid:(g + 1) * hid] for g in range(3)]
    segs = [jnp.pad(s, ((0, 0), (0, hid_pad - hid))) for s in segs]
    return jnp.concatenate(segs, axis=1)


def build_padded_params(params, emb_dim, hid_dim, ep, hp, vp):
    enc, dec = params["enc"], params["dec"]

    def gru_f32(p, in_pad):
        return {
            "w_ih": _pad2(_pad_gru_gates(p["w_ih"], hid_dim, hp), in_pad, 3 * hp),
            "w_hh": _pad2(_pad_gru_gates(p["w_hh"], hid_dim, hp), hp, 3 * hp),
            "b_ih": _pad_gru_gates(p["b_ih"], hid_dim, hp),
            "b_hh": _pad_gru_gates(p["b_hh"], hid_dim, hp),
        }

    cast = lambda x: x.astype(MATMUL_DTYPE)

    enc_f = gru_f32(enc, ep)
    enc_emb = jnp.pad(enc["embedding"], ((0, 0), (0, ep - emb_dim)))

    dec_f = gru_f32(dec, ep)
    dec_emb = _pad2(dec["embedding"], vp, ep)
    # Fold the decoder embedding table into W_ih (generated-token path);
    # fold done in f32, then cast (onehot @ EW == (onehot @ emb) @ W_ih).
    dec_ew = jnp.dot(dec_emb, dec_f["w_ih"])                 # [VP, 3HP] f32

    enc_p = {
        "embedding": cast(enc_emb),
        "w_ih": cast(enc_f["w_ih"]), "w_hh": cast(enc_f["w_hh"]),
        "b_ih": enc_f["b_ih"], "b_hh": enc_f["b_hh"],        # biases stay f32
    }
    dec_p = {
        "embedding": cast(dec_emb), "ew": cast(dec_ew),
        "w_ih": cast(dec_f["w_ih"]), "w_hh": cast(dec_f["w_hh"]),
        "b_ih": dec_f["b_ih"], "b_hh": dec_f["b_hh"],
        "w_attn": cast(_pad2(dec["w_attn"], hp, hp)),
        "w_c1": cast(_pad2(dec["w_c1"], hp, hp)),
        "w_c2": cast(_pad2(dec["w_c2"], hp, hp)),
        "b_c": _pad2(dec["b_c"], 1, hp),
        "w_out": cast(_pad2(dec["w_out"], hp, vp)),
        "b_out": _pad2(dec["b_out"], 1, vp),
    }
    return {"enc": enc_p, "dec": dec_p}


# ----------------------------------------------------------------------------
# Seq2Seq forward (mirrors the PyTorch module's forward).
# ----------------------------------------------------------------------------
def seq2seq_forward(padded_params, trg_vocab, src, trg,
                    teacher_forcing_ratio=0.5):
    max_len, batch = trg.shape
    src_len = src.shape[0]
    enc_p, dec_p = padded_params["enc"], padded_params["dec"]
    ep = enc_p["embedding"].shape[1]
    vp = dec_p["w_out"].shape[1]
    bp = _ceil_to(max(batch, SUBLANE), SUBLANE)
    steps = max_len - 1

    src_p = jnp.pad(src, ((0, 0), (0, bp - batch)))
    trg_p = jnp.pad(trg, ((0, 0), (0, bp - batch)))

    # Encoder: embedding gather in XLA, fused recurrence in one kernel.
    src_emb2 = jnp.take(enc_p["embedding"], src_p,
                        axis=0).reshape(src_len * bp, ep)
    enc_out_tm, enc_hidden = run_encoder(src_emb2, enc_p, src_len, bp)

    # Teacher-forcing coin flips: identical random stream to the reference
    # (one random.random() per reference step t in [1, max_len)); the flip at
    # step t decides the input of step t+1.  Step 1's input is always trg[0].
    flips = [random.random() < teacher_forcing_ratio for _ in range(1, max_len)]
    tf_list = [1] + [int(flips[s - 1]) for s in range(1, steps)]
    tf_flags = jnp.asarray(tf_list, dtype=jnp.int32)          # [steps]

    trg_emb2 = jnp.take(dec_p["embedding"], trg_p[:steps],
                        axis=0).reshape(steps * bp, ep)

    # Decoder: one fused kernel over all timesteps.
    logits_all = run_decoder(tf_flags, trg_emb2, enc_hidden, enc_out_tm,
                             dec_p, trg_vocab, steps, bp)     # [steps, bp, VP]

    out = jnp.concatenate(
        [jnp.zeros((1, bp, vp), jnp.float32), logits_all], axis=0)
    return out[:, :batch, :trg_vocab]                         # [T, B, V]


# ----------------------------------------------------------------------------
# Deterministic parameter init (synthetic; logical shapes of the module).
# ----------------------------------------------------------------------------
def init_params(key, src_vocab, trg_vocab, emb_dim, hid_dim):
    ks = iter(jax.random.split(key, 20))
    n = lambda shape: (0.1 * jax.random.normal(next(ks), shape)
                       ).astype(jnp.float32)
    enc = {
        "embedding": n((src_vocab, emb_dim)),
        "w_ih": n((emb_dim, 3 * hid_dim)),
        "w_hh": n((hid_dim, 3 * hid_dim)),
        "b_ih": n((1, 3 * hid_dim)),
        "b_hh": n((1, 3 * hid_dim)),
    }
    dec = {
        "embedding": n((trg_vocab, emb_dim)),
        "w_ih": n((emb_dim, 3 * hid_dim)),
        "w_hh": n((hid_dim, 3 * hid_dim)),
        "b_ih": n((1, 3 * hid_dim)),
        "b_hh": n((1, 3 * hid_dim)),
        "w_attn": n((hid_dim, hid_dim)),
        "w_c1": n((hid_dim, hid_dim)),   # acts on h_new  (concat order [h, ctx])
        "w_c2": n((hid_dim, hid_dim)),   # acts on context
        "b_c": n((1, hid_dim)),
        "w_out": n((hid_dim, trg_vocab)),
        "b_out": n((1, trg_vocab)),
    }
    return {"enc": enc, "dec": dec}


if __name__ == "__main__":
    SRC_LEN, TRG_LEN, BATCH = 8, 8, 2
    EMB_DIM, HID_DIM = 16, 32
    SRC_VOCAB, TRG_VOCAB = 20, 20
    EP = _ceil_to(EMB_DIM, LANE)      # 128
    HP = _ceil_to(HID_DIM, LANE)      # 128
    VP = _ceil_to(TRG_VOCAB, LANE)    # 128

    key = jax.random.PRNGKey(0)
    k_p, k_src, k_trg = jax.random.split(key, 3)
    params = init_params(k_p, SRC_VOCAB, TRG_VOCAB, EMB_DIM, HID_DIM)
    padded = build_padded_params(params, EMB_DIM, HID_DIM, EP, HP, VP)

    src = jax.random.randint(k_src, (SRC_LEN, BATCH), 0, SRC_VOCAB, jnp.int32)
    trg = jax.random.randint(k_trg, (TRG_LEN, BATCH), 0, TRG_VOCAB, jnp.int32)

    random.seed(0)  # deterministic teacher forcing, same mechanism as PyTorch
    out = seq2seq_forward(padded, TRG_VOCAB, src, trg, teacher_forcing_ratio=0.5)
    out = jax.block_until_ready(out)

    assert out.shape == (TRG_LEN, BATCH, TRG_VOCAB)
    assert bool(jnp.all(out[0] == 0.0))
    assert bool(jnp.all(jnp.isfinite(out)))
    print("KERNEL_OK")
</pallas_src>

<mosaic_0001>
module attributes {stable_mosaic.version = 11 : i64} {
  func.func @encoder_kernel(%arg0: i32, %arg1: memref<64x128xbf16, #tpu.memory_space<vmem>>, %arg2: memref<128x384xbf16, #tpu.memory_space<vmem>>, %arg3: memref<128x384xbf16, #tpu.memory_space<vmem>>, %arg4: memref<1x384xf32, #tpu.memory_space<vmem>>, %arg5: memref<1x384xf32, #tpu.memory_space<vmem>>, %arg6: memref<8x8x128xf32, #tpu.memory_space<vmem>>, %arg7: memref<8x128xf32, #tpu.memory_space<vmem>>, %arg8: memref<64x384xf32, #tpu.memory_space<vmem>>) attributes {dimension_semantics = [#tpu.dimension_semantics<arbitrary>], iteration_bounds = array<i64: 1>, scalar_prefetch = 0 : i64, scratch_operands = 1 : i64, tpu.core_type = #tpu.core_type<tc>, window_params = [{pipeline_mode = #tpu.pipeline_mode<synchronous>, transform_indices = @transform_0, window_bounds = array<i64: 64, 128>}, {pipeline_mode = #tpu.pipeline_mode<synchronous>, transform_indices = @transform_1, window_bounds = array<i64: 128, 384>}, {pipeline_mode = #tpu.pipeline_mode<synchronous>, transform_indices = @transform_2, window_bounds = array<i64: 128, 384>}, {pipeline_mode = #tpu.pipeline_mode<synchronous>, transform_indices = @transform_3, window_bounds = array<i64: 1, 384>}, {pipeline_mode = #tpu.pipeline_mode<synchronous>, transform_indices = @transform_4, window_bounds = array<i64: 1, 384>}, {pipeline_mode = #tpu.pipeline_mode<synchronous>, transform_indices = @transform_5, window_bounds = array<i64: 8, 8, 128>}, {pipeline_mode = #tpu.pipeline_mode<synchronous>, transform_indices = @transform_6, window_bounds = array<i64: 8, 128>}]} {
    %c0 = arith.constant 0 : index
    %c0_0 = arith.constant 0 : index
    %0 = vector.load %arg5[%c0, %c0_0] : memref<1x384xf32, #tpu.memory_space<vmem>>, vector<1x384xf32>
    %c0_1 = arith.constant 0 : index
    %c0_2 = arith.constant 0 : index
    %1 = vector.load %arg1[%c0_1, %c0_2] : memref<64x128xbf16, #tpu.memory_space<vmem>>, vector<64x128xbf16>
    %c0_3 = arith.constant 0 : index
    %c0_4 = arith.constant 0 : index
    %2 = vector.load %arg2[%c0_3, %c0_4] : memref<128x384xbf16, #tpu.memory_space<vmem>>, vector<128x384xbf16>
    %cst = arith.constant dense<0.000000e+00> : vector<64x384xf32>
    %3 = tpu.matmul %1, %2, %cst {dimension_numbers = #tpu.dot_dimension_numbers<[1], [0], [0], [1], [0, 0, 1, 1], [], []>} : vector<64x128xbf16>, vector<128x384xbf16>, vector<64x384xf32> -> vector<64x384xf32>
    %c0_5 = arith.constant 0 : index
    %c0_6 = arith.constant 0 : index
    %4 = vector.load %arg4[%c0_5, %c0_6] : memref<1x384xf32, #tpu.memory_space<vmem>>, vector<1x384xf32>
    %5 = vector.broadcast %4 : vector<1x384xf32> to vector<64x384xf32>
    %6 = arith.addf %3, %5 : vector<64x384xf32>
    %c0_7 = arith.constant 0 : index
    %c0_8 = arith.constant 0 : index
    %7 = vector.load %arg8[%c0_7, %c0_8] : memref<64x384xf32, #tpu.memory_space<vmem>>, vector<64x384xf32>
    tpu.vector_store %arg8[%c0_7, %c0_8], %6 {strides = array<i32>} : memref<64x384xf32, #tpu.memory_space<vmem>>, vector<64x384xf32>,
    %cst_9 = arith.constant 0.000000e+00 : f32
    %8 = vector.broadcast %cst_9 : f32 to vector<8x128xf32>
    %c0_i32 = arith.constant 0 : i32
    %c8_i32 = arith.constant 8 : i32
    %9 = arith.muli %c0_i32, %c8_i32 : i32
    %10 = tpu.assume_multiple %9, 8 : i32
    %11 = arith.index_cast %10 : i32 to index
    %c0_10 = arith.constant 0 : index
    %12 = vector.load %arg8[%11, %c0_10] : memref<64x384xf32, #tpu.memory_space<vmem>>, vector<8x384xf32>
    %13 = arith.truncf %8 : vector<8x128xf32> to vector<8x128xbf16>
    %c0_11 = arith.constant 0 : index
    %c0_12 = arith.constant 0 : index
    %14 = vector.load %arg3[%c0_11, %c0_12] : memref<128x384xbf16, #tpu.memory_space<vmem>>, vector<128x384xbf16>
    %cst_13 = arith.constant dense<0.000000e+00> : vector<8x384xf32>
    %15 = tpu.matmul %13, %14, %cst_13 {dimension_numbers = #tpu.dot_dimension_numbers<[1], [0], [0], [1], [0, 0, 1, 1], [], []>} : vector<8x128xbf16>, vector<128x384xbf16>, vector<8x384xf32> -> vector<8x384xf32>
    %16 = vector.broadcast %0 : vector<1x384xf32> to vector<8x384xf32>
    %17 = arith.addf %15, %16 : vector<8x384xf32>
    %18 = vector.extract_strided_slice %12 {offsets = [0, 0], sizes = [8, 128], strides = [1, 1]} : vector<8x384xf32> to vector<8x128xf32>
    %19 = vector.extract_strided_slice %12 {offsets = [0, 128], sizes = [8, 128], strides = [1, 1]} : vector<8x384xf32> to vector<8x128xf32>
    %20 = vector.extract_strided_slice %12 {offsets = [0, 256], sizes = [8, 128], strides = [1, 1]} : vector<8x384xf32> to vector<8x128xf32>
    %21 = vector.extract_strided_slice %17 {offsets = [0, 0], sizes = [8, 128], strides = [1, 1]} : vector<8x384xf32> to vector<8x128xf32>
    %22 = vector.extract_strided_slice %17 {offsets = [0, 128], sizes = [8, 128], strides = [1, 1]} : vector<8x384xf32> to vector<8x128xf32>
    %23 = vector.extract_strided_slice %17 {offsets = [0, 256], sizes = [8, 128], strides = [1, 1]} : vector<8x384xf32> to vector<8x128xf32>
    %24 = arith.addf %18, %21 : vector<8x128xf32>
    %25 = arith.negf %24 : vector<8x128xf32>
    %26 = math.exp %25 : vector<8x128xf32>
    %cst_14 = arith.constant 1.000000e+00 : f32
    %27 = vector.broadcast %cst_14 : f32 to vector<8x128xf32>
    %28 = arith.addf %27, %26 : vector<8x128xf32>
    %29 = arith.divf %27, %28 : vector<8x128xf32>
    %30 = arith.addf %19, %22 : vector<8x128xf32>
    %31 = arith.negf %30 : vector<8x128xf32>
    %32 = math.exp %31 : vector<8x128xf32>
    %cst_15 = arith.constant 1.000000e+00 : f32
    %33 = vector.broadcast %cst_15 : f32 to vector<8x128xf32>
    %34 = arith.addf %33, %32 : vector<8x128xf32>
    %35 = arith.divf %33, %34 : vector<8x128xf32>
    %36 = arith.mulf %29, %23 : vector<8x128xf32>
    %37 = arith.addf %20, %36 : vector<8x128xf32>
    %38 = math.tanh %37 : vector<8x128xf32>
    %cst_16 = arith.constant 1.000000e+00 : f32
    %39 = vector.broadcast %cst_16 : f32 to vector<8x128xf32>
    %40 = arith.subf %39, %35 : vector<8x128xf32>
    %41 = arith.mulf %40, %38 : vector<8x128xf32>
    %42 = arith.mulf %35, %8 : vector<8x128xf32>
    %43 = arith.addf %41, %42 : vector<8x128xf32>
    %44 = arith.index_cast %c0_i32 : i32 to index
    %c0_17 = arith.constant 0 : index
    %c0_18 = arith.constant 0 : index
    %45 = vector.load %arg6[%44, %c0_17, %c0_18] : memref<8x8x128xf32, #tpu.memory_space<vmem>>, vector<1x8x128xf32>
    %46 = vector.shape_cast %45 : vector<1x8x128xf32> to vector<8x128xf32>
    %47 = vector.shape_cast %43 : vector<8x128xf32> to vector<1x8x128xf32>
    tpu.vector_store %arg6[%44, %c0_17, %c0_18], %47 {strides = array<i32>} : memref<8x8x128xf32, #tpu.memory_space<vmem>>, vector<1x8x128xf32>,
    %c1_i32 = arith.constant 1 : i32
    %c8_i32_19 = arith.constant 8 : i32
    %48 = arith.muli %c1_i32, %c8_i32_19 : i32
    %49 = tpu.assume_multiple %48, 8 : i32
    %50 = arith.index_cast %49 : i32 to index
    %c0_20 = arith.constant 0 : index
    %51 = vector.load %arg8[%50, %c0_20] : memref<64x384xf32, #tpu.memory_space<vmem>>, vector<8x384xf32>
    %52 = arith.truncf %43 : vector<8x128xf32> to vector<8x128xbf16>
    %c0_21 = arith.constant 0 : index
    %c0_22 = arith.constant 0 : index
    %53 = vector.load %arg3[%c0_21, %c0_22] : memref<128x384xbf16, #tpu.memory_space<vmem>>, vector<128x384xbf16>
    %cst_23 = arith.constant dense<0.000000e+00> : vector<8x384xf32>
    %54 = tpu.matmul %52, %53, %cst_23 {dimension_numbers = #tpu.dot_dimension_numbers<[1], [0], [0], [1], [0, 0, 1, 1], [], []>} : vector<8x128xbf16>, vector<128x384xbf16>, vector<8x384xf32> -> vector<8x384xf32>
    %55 = vector.broadcast %0 : vector<1x384xf32> to vector<8x384xf32>
    %56 = arith.addf %54, %55 : vector<8x384xf32>
    %57 = vector.extract_strided_slice %51 {offsets = [0, 0], sizes = [8, 128], strides = [1, 1]} : vector<8x384xf32> to vector<8x128xf32>
    %58 = vector.extract_strided_slice %51 {offsets = [0, 128], sizes = [8, 128], strides = [1, 1]} : vector<8x384xf32> to vector<8x128xf32>
    %59 = vector.extract_strided_slice %51 {offsets = [0, 256], sizes = [8, 128], strides = [1, 1]} : vector<8x384xf32> to vector<8x128xf32>
    %60 = vector.extract_strided_slice %56 {offsets = [0, 0], sizes = [8, 128], strides = [1, 1]} : vector<8x384xf32> to vector<8x128xf32>
    %61 = vector.extract_strided_slice %56 {offsets = [0, 128], sizes = [8, 128], strides = [1, 1]} : vector<8x384xf32> to vector<8x128xf32>
    %62 = vector.extract_strided_slice %56 {offsets = [0, 256], sizes = [8, 128], strides = [1, 1]} : vector<8x384xf32> to vector<8x128xf32>
    %63 = arith.addf %57, %60 : vector<8x128xf32>
    %64 = arith.negf %63 : vector<8x128xf32>
    %65 = math.exp %64 : vector<8x128xf32>
    %cst_24 = arith.constant 1.000000e+00 : f32
    %66 = vector.broadcast %cst_24 : f32 to vector<8x128xf32>
    %67 = arith.addf %66, %65 : vector<8x128xf32>
    %68 = arith.divf %66, %67 : vector<8x128xf32>
    %69 = arith.addf %58, %61 : vector<8x128xf32>
    %70 = arith.negf %69 : vector<8x128xf32>
    %71 = math.exp %70 : vector<8x128xf32>
    %cst_25 = arith.constant 1.000000e+00 : f32
    %72 = vector.broadcast %cst_25 : f32 to vector<8x128xf32>
    %73 = arith.addf %72, %71 : vector<8x128xf32>
    %74 = arith.divf %72, %73 : vector<8x128xf32>
    %75 = arith.mulf %68, %62 : vector<8x128xf32>
    %76 = arith.addf %59, %75 : vector<8x128xf32>
    %77 = math.tanh %76 : vector<8x128xf32>
    %cst_26 = arith.constant 1.000000e+00 : f32
    %78 = vector.broadcast %cst_26 : f32 to vector<8x128xf32>
    %79 = arith.subf %78, %74 : vector<8x128xf32>
    %80 = arith.mulf %79, %77 : vector<8x128xf32>
    %81 = arith.mulf %74, %43 : vector<8x128xf32>
    %82 = arith.addf %80, %81 : vector<8x128xf32>
    %83 = arith.index_cast %c1_i32 : i32 to index
    %c0_27 = arith.constant 0 : index
    %c0_28 = arith.constant 0 : index
    %84 = vector.load %arg6[%83, %c0_27, %c0_28] : memref<8x8x128xf32, #tpu.memory_space<vmem>>, vector<1x8x128xf32>
    %85 = vector.shape_cast %84 : vector<1x8x128xf32> to vector<8x128xf32>
    %86 = vector.shape_cast %82 : vector<8x128xf32> to vector<1x8x128xf32>
    tpu.vector_store %arg6[%83, %c0_27, %c0_28], %86 {strides = array<i32>} : memref<8x8x128xf32, #tpu.memory_space<vmem>>, vector<1x8x128xf32>,
    %c2_i32 = arith.constant 2 : i32
    %c8_i32_29 = arith.constant 8 : i32
    %87 = arith.muli %c2_i32, %c8_i32_29 : i32
    %88 = tpu.assume_multiple %87, 8 : i32
    %89 = arith.index_cast %88 : i32 to index
    %c0_30 = arith.constant 0 : index
    %90 = vector.load %arg8[%89, %c0_30] : memref<64x384xf32, #tpu.memory_space<vmem>>, vector<8x384xf32>
    %91 = arith.truncf %82 : vector<8x128xf32> to vector<8x128xbf16>
    %c0_31 = arith.constant 0 : index
    %c0_32 = arith.constant 0 : index
    %92 = vector.load %arg3[%c0_31, %c0_32] : memref<128x384xbf16, #tpu.memory_space<vmem>>, vector<128x384xbf16>
    %cst_33 = arith.constant dense<0.000000e+00> : vector<8x384xf32>
    %93 = tpu.matmul %91, %92, %cst_33 {dimension_numbers = #tpu.dot_dimension_numbers<[1], [0], [0], [1], [0, 0, 1, 1], [], []>} : vector<8x128xbf16>, vector<128x384xbf16>, vector<8x384xf32> -> vector<8x384xf32>
    %94 = vector.broadcast %0 : vector<1x384xf32> to vector<8x384xf32>
    %95 = arith.addf %93, %94 : vector<8x384xf32>
    %96 = vector.extract_strided_slice %90 {offsets = [0, 0], sizes = [8, 128], strides = [1, 1]} : vector<8x384xf32> to vector<8x128xf32>
    %97 = vector.extract_strided_slice %90 {offsets = [0, 128], sizes = [8, 128], strides = [1, 1]} : vector<8x384xf32> to vector<8x128xf32>
    %98 = vector.extract_strided_slice %90 {offsets = [0, 256], sizes = [8, 128], strides = [1, 1]} : vector<8x384xf32> to vector<8x128xf32>
    %99 = vector.extract_strided_slice %95 {offsets = [0, 0], sizes = [8, 128], strides = [1, 1]} : vector<8x384xf32> to vector<8x128xf32>
    %100 = vector.extract_strided_slice %95 {offsets = [0, 128], sizes = [8, 128], strides = [1, 1]} : vector<8x384xf32> to vector<8x128xf32>
    %101 = vector.extract_strided_slice %95 {offsets = [0, 256], sizes = [8, 128], strides = [1, 1]} : vector<8x384xf32> to vector<8x128xf32>
    %102 = arith.addf %96, %99 : vector<8x128xf32>
    %103 = arith.negf %102 : vector<8x128xf32>
    %104 = math.exp %103 : vector<8x128xf32>
    %cst_34 = arith.constant 1.000000e+00 : f32
    %105 = vector.broadcast %cst_34 : f32 to vector<8x128xf32>
    %106 = arith.addf %105, %104 : vector<8x128xf32>
    %107 = arith.divf %105, %106 : vector<8x128xf32>
    %108 = arith.addf %97, %100 : vector<8x128xf32>
    %109 = arith.negf %108 : vector<8x128xf32>
    %110 = math.exp %109 : vector<8x128xf32>
    %cst_35 = arith.constant 1.000000e+00 : f32
    %111 = vector.broadcast %cst_35 : f32 to vector<8x128xf32>
    %112 = arith.addf %111, %110 : vector<8x128xf32>
    %113 = arith.divf %111, %112 : vector<8x128xf32>
    %114 = arith.mulf %107, %101 : vector<8x128xf32>
    %115 = arith.addf %98, %114 : vector<8x128xf32>
    %116 = math.tanh %115 : vector<8x128xf32>
    %cst_36 = arith.constant 1.000000e+00 : f32
    %117 = vector.broadcast %cst_36 : f32 to vector<8x128xf32>
    %118 = arith.subf %117, %113 : vector<8x128xf32>
    %119 = arith.mulf %118, %116 : vector<8x128xf32>
    %120 = arith.mulf %113, %82 : vector<8x128xf32>
    %121 = arith.addf %119, %120 : vector<8x128xf32>
    %122 = arith.index_cast %c2_i32 : i32 to index
    %c0_37 = arith.constant 0 : index
    %c0_38 = arith.constant 0 : index
    %123 = vector.load %arg6[%122, %c0_37, %c0_38] : memref<8x8x128xf32, #tpu.memory_space<vmem>>, vector<1x8x128xf32>
    %124 = vector.shape_cast %123 : vector<1x8x128xf32> to vector<8x128xf32>
    %125 = vector.shape_cast %121 : vector<8x128xf32> to vector<1x8x128xf32>
    tpu.vector_store %arg6[%122, %c0_37, %c0_38], %125 {strides = array<i32>} : memref<8x8x128xf32, #tpu.memory_space<vmem>>, vector<1x8x128xf32>,
    %c3_i32 = arith.constant 3 : i32
    %c8_i32_39 = arith.constant 8 : i32
    %126 = arith.muli %c3_i32, %c8_i32_39 : i32
    %127 = tpu.assume_multiple %126, 8 : i32
    %128 = arith.index_cast %127 : i32 to index
    %c0_40 = arith.constant 0 : index
    %129 = vector.load %arg8[%128, %c0_40] : memref<64x384xf32, #tpu.memory_space<vmem>>, vector<8x384xf32>
    %130 = arith.truncf %121 : vector<8x128xf32> to vector<8x128xbf16>
    %c0_41 = arith.constant 0 : index
    %c0_42 = arith.constant 0 : index
    %131 = vector.load %arg3[%c0_41, %c0_42] : memref<128x384xbf16, #tpu.memory_space<vmem>>, vector<128x384xbf16>
    %cst_43 = arith.constant dense<0.000000e+00> : vector<8x384xf32>
    %132 = tpu.matmul %130, %131, %cst_43 {dimension_numbers = #tpu.dot_dimension_numbers<[1], [0], [0], [1], [0, 0, 1, 1], [], []>} : vector<8x128xbf16>, vector<128x384xbf16>, vector<8x384xf32> -> vector<8x384xf32>
    %133 = vector.broadcast %0 : vector<1x384xf32> to vector<8x384xf32>
    %134 = arith.addf %132, %133 : vector<8x384xf32>
    %135 = vector.extract_strided_slice %129 {offsets = [0, 0], sizes = [8, 128], strides = [1, 1]} : vector<8x384xf32> to vector<8x128xf32>
    %136 = vector.extract_strided_slice %129 {offsets = [0, 128], sizes = [8, 128], strides = [1, 1]} : vector<8x384xf32> to vector<8x128xf32>
    %137 = vector.extract_strided_slice %129 {offsets = [0, 256], sizes = [8, 128], strides = [1, 1]} : vector<8x384xf32> to vector<8x128xf32>
    %138 = vector.extract_strided_slice %134 {offsets = [0, 0], sizes = [8, 128], strides = [1, 1]} : vector<8x384xf32> to vector<8x128xf32>
    %139 = vector.extract_strided_slice %134 {offsets = [0, 128], sizes = [8, 128], strides = [1, 1]} : vector<8x384xf32> to vector<8x128xf32>
    %140 = vector.extract_strided_slice %134 {offsets = [0, 256], sizes = [8, 128], strides = [1, 1]} : vector<8x384xf32> to vector<8x128xf32>
    %141 = arith.addf %135, %138 : vector<8x128xf32>
    %142 = arith.negf %141 : vector<8x128xf32>
    %143 = math.exp %142 : vector<8x128xf32>
    %cst_44 = arith.constant 1.000000e+00 : f32
    %144 = vector.broadcast %cst_44 : f32 to vector<8x128xf32>
    %145 = arith.addf %144, %143 : vector<8x128xf32>
    %146 = arith.divf %144, %145 : vector<8x128xf32>
    %147 = arith.addf %136, %139 : vector<8x128xf32>
    %148 = arith.negf %147 : vector<8x128xf32>
    %149 = math.exp %148 : vector<8x128xf32>
    %cst_45 = arith.constant 1.000000e+00 : f32
    %150 = vector.broadcast %cst_45 : f32 to vector<8x128xf32>
    %151 = arith.addf %150, %149 : vector<8x128xf32>
    %152 = arith.divf %150, %151 : vector<8x128xf32>
    %153 = arith.mulf %146, %140 : vector<8x128xf32>
    %154 = arith.addf %137, %153 : vector<8x128xf32>
    %155 = math.tanh %154 : vector<8x128xf32>
    %cst_46 = arith.constant 1.000000e+00 : f32
    %156 = vector.broadcast %cst_46 : f32 to vector<8x128xf32>
    %157 = arith.subf %156, %152 : vector<8x128xf32>
    %158 = arith.mulf %157, %155 : vector<8x128xf32>
    %159 = arith.mulf %152, %121 : vector<8x128xf32>
    %160 = arith.addf %158, %159 : vector<8x128xf32>
    %161 = arith.index_cast %c3_i32 : i32 to index
    %c0_47 = arith.constant 0 : index
    %c0_48 = arith.constant 0 : index
    %162 = vector.load %arg6[%161, %c0_47, %c0_48] : memref<8x8x128xf32, #tpu.memory_space<vmem>>, vector<1x8x128xf32>
    %163 = vector.shape_cast %162 : vector<1x8x128xf32> to vector<8x128xf32>
    %164 = vector.shape_cast %160 : vector<8x128xf32> to vector<1x8x128xf32>
    tpu.vector_store %arg6[%161, %c0_47, %c0_48], %164 {strides = array<i32>} : memref<8x8x128xf32, #tpu.memory_space<vmem>>, vector<1x8x128xf32>,
    %c4_i32 = arith.constant 4 : i32
    %c8_i32_49 = arith.constant 8 : i32
    %165 = arith.muli %c4_i32, %c8_i32_49 : i32
    %166 = tpu.assume_multiple %165, 8 : i32
    %167 = arith.index_cast %166 : i32 to index
    %c0_50 = arith.constant 0 : index
    %168 = vector.load %arg8[%167, %c0_50] : memref<64x384xf32, #tpu.memory_space<vmem>>, vector<8x384xf32>
    %169 = arith.truncf %160 : vector<8x128xf32> to vector<8x128xbf16>
    %c0_51 = arith.constant 0 : index
    %c0_52 = arith.constant 0 : index
    %170 = vector.load %arg3[%c0_51, %c0_52] : memref<128x384xbf16, #tpu.memory_space<vmem>>, vector<128x384xbf16>
    %cst_53 = arith.constant dense<0.000000e+00> : vector<8x384xf32>
    %171 = tpu.matmul %169, %170, %cst_53 {dimension_numbers = #tpu.dot_dimension_numbers<[1], [0], [0], [1], [0, 0, 1, 1], [], []>} : vector<8x128xbf16>, vector<128x384xbf16>, vector<8x384xf32> -> vector<8x384xf32>
    %172 = vector.broadcast %0 : vector<1x384xf32> to vector<8x384xf32>
    %173 = arith.addf %171, %172 : vector<8x384xf32>
    %174 = vector.extract_strided_slice %168 {offsets = [0, 0], sizes = [8, 128], strides = [1, 1]} : vector<8x384xf32> to vector<8x128xf32>
    %175 = vector.extract_strided_slice %168 {offsets = [0, 128], sizes = [8, 128], strides = [1, 1]} : vector<8x384xf32> to vector<8x128xf32>
    %176 = vector.extract_strided_slice %168 {offsets = [0, 256], sizes = [8, 128], strides = [1, 1]} : vector<8x384xf32> to vector<8x128xf32>
    %177 = vector.extract_strided_slice %173 {offsets = [0, 0], sizes = [8, 128], strides = [1, 1]} : vector<8x384xf32> to vector<8x128xf32>
    %178 = vector.extract_strided_slice %173 {offsets = [0, 128], sizes = [8, 128], strides = [1, 1]} : vector<8x384xf32> to vector<8x128xf32>
    %179 = vector.extract_strided_slice %173 {offsets = [0, 256], sizes = [8, 128], strides = [1, 1]} : vector<8x384xf32> to vector<8x128xf32>
    %180 = arith.addf %174, %177 : vector<8x128xf32>
    %181 = arith.negf %180 : vector<8x128xf32>
    %182 = math.exp %181 : vector<8x128xf32>
    %cst_54 = arith.constant 1.000000e+00 : f32
    %183 = vector.broadcast %cst_54 : f32 to vector<8x128xf32>
    %184 = arith.addf %183, %182 : vector<8x128xf32>
    %185 = arith.divf %183, %184 : vector<8x128xf32>
    %186 = arith.addf %175, %178 : vector<8x128xf32>
    %187 = arith.negf %186 : vector<8x128xf32>
    %188 = math.exp %187 : vector<8x128xf32>
    %cst_55 = arith.constant 1.000000e+00 : f32
    %189 = vector.broadcast %cst_55 : f32 to vector<8x128xf32>
    %190 = arith.addf %189, %188 : vector<8x128xf32>
    %191 = arith.divf %189, %190 : vector<8x128xf32>
    %192 = arith.mulf %185, %179 : vector<8x128xf32>
    %193 = arith.addf %176, %192 : vector<8x128xf32>
    %194 = math.tanh %193 : vector<8x128xf32>
    %cst_56 = arith.constant 1.000000e+00 : f32
    %195 = vector.broadcast %cst_56 : f32 to vector<8x128xf32>
    %196 = arith.subf %195, %191 : vector<8x128xf32>
    %197 = arith.mulf %196, %194 : vector<8x128xf32>
    %198 = arith.mulf %191, %160 : vector<8x128xf32>
    %199 = arith.addf %197, %198 : vector<8x128xf32>
    %200 = arith.index_cast %c4_i32 : i32 to index
    %c0_57 = arith.constant 0 : index
    %c0_58 = arith.constant 0 : index
    %201 = vector.load %arg6[%200, %c0_57, %c0_58] : memref<8x8x128xf32, #tpu.memory_space<vmem>>, vector<1x8x128xf32>
    %202 = vector.shape_cast %201 : vector<1x8x128xf32> to vector<8x128xf32>
    %203 = vector.shape_cast %199 : vector<8x128xf32> to vector<1x8x128xf32>
    tpu.vector_store %arg6[%200, %c0_57, %c0_58], %203 {strides = array<i32>} : memref<8x8x128xf32, #tpu.memory_space<vmem>>, vector<1x8x128xf32>,
    %c5_i32 = arith.constant 5 : i32
    %c8_i32_59 = arith.constant 8 : i32
    %204 = arith.muli %c5_i32, %c8_i32_59 : i32
    %205 = tpu.assume_multiple %204, 8 : i32
    %206 = arith.index_cast %205 : i32 to index
    %c0_60 = arith.constant 0 : index
    %207 = vector.load %arg8[%206, %c0_60] : memref<64x384xf32, #tpu.memory_space<vmem>>, vector<8x384xf32>
    %208 = arith.truncf %199 : vector<8x128xf32> to vector<8x128xbf16>
    %c0_61 = arith.constant 0 : index
    %c0_62 = arith.constant 0 : index
    %209 = vector.load %arg3[%c0_61, %c0_62] : memref<128x384xbf16, #tpu.memory_space<vmem>>, vector<128x384xbf16>
    %cst_63 = arith.constant dense<0.000000e+00> : vector<8x384xf32>
    %210 = tpu.matmul %208, %209, %cst_63 {dimension_numbers = #tpu.dot_dimension_numbers<[1], [0], [0], [1], [0, 0, 1, 1], [], []>} : vector<8x128xbf16>, vector<128x384xbf16>, vector<8x384xf32> -> vector<8x384xf32>
    %211 = vector.broadcast %0 : vector<1x384xf32> to vector<8x384xf32>
    %212 = arith.addf %210, %211 : vector<8x384xf32>
    %213 = vector.extract_strided_slice %207 {offsets = [0, 0], sizes = [8, 128], strides = [1, 1]} : vector<8x384xf32> to vector<8x128xf32>
    %214 = vector.extract_strided_slice %207 {offsets = [0, 128], sizes = [8, 128], strides = [1, 1]} : vector<8x384xf32> to vector<8x128xf32>
    %215 = vector.extract_strided_slice %207 {offsets = [0, 256], sizes = [8, 128], strides = [1, 1]} : vector<8x384xf32> to vector<8x128xf32>
    %216 = vector.extract_strided_slice %212 {offsets = [0, 0], sizes = [8, 128], strides = [1, 1]} : vector<8x384xf32> to vector<8x128xf32>
    %217 = vector.extract_strided_slice %212 {offsets = [0, 128], sizes = [8, 128], strides = [1, 1]} : vector<8x384xf32> to vector<8x128xf32>
    %218 = vector.extract_strided_slice %212 {offsets = [0, 256], sizes = [8, 128], strides = [1, 1]} : vector<8x384xf32> to vector<8x128xf32>
    %219 = arith.addf %213, %216 : vector<8x128xf32>
    %220 = arith.negf %219 : vector<8x128xf32>
    %221 = math.exp %220 : vector<8x128xf32>
    %cst_64 = arith.constant 1.000000e+00 : f32
    %222 = vector.broadcast %cst_64 : f32 to vector<8x128xf32>
    %223 = arith.addf %222, %221 : vector<8x128xf32>
    %224 = arith.divf %222, %223 : vector<8x128xf32>
    %225 = arith.addf %214, %217 : vector<8x128xf32>
    %226 = arith.negf %225 : vector<8x128xf32>
    %227 = math.exp %226 : vector<8x128xf32>
    %cst_65 = arith.constant 1.000000e+00 : f32
    %228 = vector.broadcast %cst_65 : f32 to vector<8x128xf32>
    %229 = arith.addf %228, %227 : vector<8x128xf32>
    %230 = arith.divf %228, %229 : vector<8x128xf32>
    %231 = arith.mulf %224, %218 : vector<8x128xf32>
    %232 = arith.addf %215, %231 : vector<8x128xf32>
    %233 = math.tanh %232 : vector<8x128xf32>
    %cst_66 = arith.constant 1.000000e+00 : f32
    %234 = vector.broadcast %cst_66 : f32 to vector<8x128xf32>
    %235 = arith.subf %234, %230 : vector<8x128xf32>
    %236 = arith.mulf %235, %233 : vector<8x128xf32>
    %237 = arith.mulf %230, %199 : vector<8x128xf32>
    %238 = arith.addf %236, %237 : vector<8x128xf32>
    %239 = arith.index_cast %c5_i32 : i32 to index
    %c0_67 = arith.constant 0 : index
    %c0_68 = arith.constant 0 : index
    %240 = vector.load %arg6[%239, %c0_67, %c0_68] : memref<8x8x128xf32, #tpu.memory_space<vmem>>, vector<1x8x128xf32>
    %241 = vector.shape_cast %240 : vector<1x8x128xf32> to vector<8x128xf32>
    %242 = vector.shape_cast %238 : vector<8x128xf32> to vector<1x8x128xf32>
    tpu.vector_store %arg6[%239, %c0_67, %c0_68], %242 {strides = array<i32>} : memref<8x8x128xf32, #tpu.memory_space<vmem>>, vector<1x8x128xf32>,
    %c6_i32 = arith.constant 6 : i32
    %c8_i32_69 = arith.constant 8 : i32
    %243 = arith.muli %c6_i32, %c8_i32_69 : i32
    %244 = tpu.assume_multiple %243, 8 : i32
    %245 = arith.index_cast %244 : i32 to index
    %c0_70 = arith.constant 0 : index
    %246 = vector.load %arg8[%245, %c0_70] : memref<64x384xf32, #tpu.memory_space<vmem>>, vector<8x384xf32>
    %247 = arith.truncf %238 : vector<8x128xf32> to vector<8x128xbf16>
    %c0_71 = arith.constant 0 : index
    %c0_72 = arith.constant 0 : index
    %248 = vector.load %arg3[%c0_71, %c0_72] : memref<128x384xbf16, #tpu.memory_space<vmem>>, vector<128x384xbf16>
    %cst_73 = arith.constant dense<0.000000e+00> : vector<8x384xf32>
    %249 = tpu.matmul %247, %248, %cst_73 {dimension_numbers = #tpu.dot_dimension_numbers<[1], [0], [0], [1], [0, 0, 1, 1], [], []>} : vector<8x128xbf16>, vector<128x384xbf16>, vector<8x384xf32> -> vector<8x384xf32>
    %250 = vector.broadcast %0 : vector<1x384xf32> to vector<8x384xf32>
    %251 = arith.addf %249, %250 : vector<8x384xf32>
    %252 = vector.extract_strided_slice %246 {offsets = [0, 0], sizes = [8, 128], strides = [1, 1]} : vector<8x384xf32> to vector<8x128xf32>
    %253 = vector.extract_strided_slice %246 {offsets = [0, 128], sizes = [8, 128], strides = [1, 1]} : vector<8x384xf32> to vector<8x128xf32>
    %254 = vector.extract_strided_slice %246 {offsets = [0, 256], sizes = [8, 128], strides = [1, 1]} : vector<8x384xf32> to vector<8x128xf32>
    %255 = vector.extract_strided_slice %251 {offsets = [0, 0], sizes = [8, 128], strides = [1, 1]} : vector<8x384xf32> to vector<8x128xf32>
    %256 = vector.extract_strided_slice %251 {offsets = [0, 128], sizes = [8, 128], strides = [1, 1]} : vector<8x384xf32> to vector<8x128xf32>
    %257 = vector.extract_strided_slice %251 {offsets = [0, 256], sizes = [8, 128], strides = [1, 1]} : vector<8x384xf32> to vector<8x128xf32>
    %258 = arith.addf %252, %255 : vector<8x128xf32>
    %259 = arith.negf %258 : vector<8x128xf32>
    %260 = math.exp %259 : vector<8x128xf32>
    %cst_74 = arith.constant 1.000000e+00 : f32
    %261 = vector.broadcast %cst_74 : f32 to vector<8x128xf32>
    %262 = arith.addf %261, %260 : vector<8x128xf32>
    %263 = arith.divf %261, %262 : vector<8x128xf32>
    %264 = arith.addf %253, %256 : vector<8x128xf32>
    %265 = arith.negf %264 : vector<8x128xf32>
    %266 = math.exp %265 : vector<8x128xf32>
    %cst_75 = arith.constant 1.000000e+00 : f32
    %267 = vector.broadcast %cst_75 : f32 to vector<8x128xf32>
    %268 = arith.addf %267, %266 : vector<8x128xf32>
    %269 = arith.divf %267, %268 : vector<8x128xf32>
    %270 = arith.mulf %263, %257 : vector<8x128xf32>
    %271 = arith.addf %254, %270 : vector<8x128xf32>
    %272 = math.tanh %271 : vector<8x128xf32>
    %cst_76 = arith.constant 1.000000e+00 : f32
    %273 = vector.broadcast %cst_76 : f32 to vector<8x128xf32>
    %274 = arith.subf %273, %269 : vector<8x128xf32>
    %275 = arith.mulf %274, %272 : vector<8x128xf32>
    %276 = arith.mulf %269, %238 : vector<8x128xf32>
    %277 = arith.addf %275, %276 : vector<8x128xf32>
    %278 = arith.index_cast %c6_i32 : i32 to index
    %c0_77 = arith.constant 0 : index
    %c0_78 = arith.constant 0 : index
    %279 = vector.load %arg6[%278, %c0_77, %c0_78] : memref<8x8x128xf32, #tpu.memory_space<vmem>>, vector<1x8x128xf32>
    %280 = vector.shape_cast %279 : vector<1x8x128xf32> to vector<8x128xf32>
    %281 = vector.shape_cast %277 : vector<8x128xf32> to vector<1x8x128xf32>
    tpu.vector_store %arg6[%278, %c0_77, %c0_78], %281 {strides = array<i32>} : memref<8x8x128xf32, #tpu.memory_space<vmem>>, vector<1x8x128xf32>,
    %c7_i32 = arith.constant 7 : i32
    %c8_i32_79 = arith.constant 8 : i32
    %282 = arith.muli %c7_i32, %c8_i32_79 : i32
    %283 = tpu.assume_multiple %282, 8 : i32
    %284 = arith.index_cast %283 : i32 to index
    %c0_80 = arith.constant 0 : index
    %285 = vector.load %arg8[%284, %c0_80] : memref<64x384xf32, #tpu.memory_space<vmem>>, vector<8x384xf32>
    %286 = arith.truncf %277 : vector<8x128xf32> to vector<8x128xbf16>
    %c0_81 = arith.constant 0 : index
    %c0_82 = arith.constant 0 : index
    %287 = vector.load %arg3[%c0_81, %c0_82] : memref<128x384xbf16, #tpu.memory_space<vmem>>, vector<128x384xbf16>
    %cst_83 = arith.constant dense<0.000000e+00> : vector<8x384xf32>
    %288 = tpu.matmul %286, %287, %cst_83 {dimension_numbers = #tpu.dot_dimension_numbers<[1], [0], [0], [1], [0, 0, 1, 1], [], []>} : vector<8x128xbf16>, vector<128x384xbf16>, vector<8x384xf32> -> vector<8x384xf32>
    %289 = vector.broadcast %0 : vector<1x384xf32> to vector<8x384xf32>
    %290 = arith.addf %288, %289 : vector<8x384xf32>
    %291 = vector.extract_strided_slice %285 {offsets = [0, 0], sizes = [8, 128], strides = [1, 1]} : vector<8x384xf32> to vector<8x128xf32>
    %292 = vector.extract_strided_slice %285 {offsets = [0, 128], sizes = [8, 128], strides = [1, 1]} : vector<8x384xf32> to vector<8x128xf32>
    %293 = vector.extract_strided_slice %285 {offsets = [0, 256], sizes = [8, 128], strides = [1, 1]} : vector<8x384xf32> to vector<8x128xf32>
    %294 = vector.extract_strided_slice %290 {offsets = [0, 0], sizes = [8, 128], strides = [1, 1]} : vector<8x384xf32> to vector<8x128xf32>
    %295 = vector.extract_strided_slice %290 {offsets = [0, 128], sizes = [8, 128], strides = [1, 1]} : vector<8x384xf32> to vector<8x128xf32>
    %296 = vector.extract_strided_slice %290 {offsets = [0, 256], sizes = [8, 128], strides = [1, 1]} : vector<8x384xf32> to vector<8x128xf32>
    %297 = arith.addf %291, %294 : vector<8x128xf32>
    %298 = arith.negf %297 : vector<8x128xf32>
    %299 = math.exp %298 : vector<8x128xf32>
    %cst_84 = arith.constant 1.000000e+00 : f32
    %300 = vector.broadcast %cst_84 : f32 to vector<8x128xf32>
    %301 = arith.addf %300, %299 : vector<8x128xf32>
    %302 = arith.divf %300, %301 : vector<8x128xf32>
    %303 = arith.addf %292, %295 : vector<8x128xf32>
    %304 = arith.negf %303 : vector<8x128xf32>
    %305 = math.exp %304 : vector<8x128xf32>
    %cst_85 = arith.constant 1.000000e+00 : f32
    %306 = vector.broadcast %cst_85 : f32 to vector<8x128xf32>
    %307 = arith.addf %306, %305 : vector<8x128xf32>
    %308 = arith.divf %306, %307 : vector<8x128xf32>
    %309 = arith.mulf %302, %296 : vector<8x128xf32>
    %310 = arith.addf %293, %309 : vector<8x128xf32>
    %311 = math.tanh %310 : vector<8x128xf32>
    %cst_86 = arith.constant 1.000000e+00 : f32
    %312 = vector.broadcast %cst_86 : f32 to vector<8x128xf32>
    %313 = arith.subf %312, %308 : vector<8x128xf32>
    %314 = arith.mulf %313, %311 : vector<8x128xf32>
    %315 = arith.mulf %308, %277 : vector<8x128xf32>
    %316 = arith.addf %314, %315 : vector<8x128xf32>
    %317 = arith.index_cast %c7_i32 : i32 to index
    %c0_87 = arith.constant 0 : index
    %c0_88 = arith.constant 0 : index
    %318 = vector.load %arg6[%317, %c0_87, %c0_88] : memref<8x8x128xf32, #tpu.memory_space<vmem>>, vector<1x8x128xf32>
    %319 = vector.shape_cast %318 : vector<1x8x128xf32> to vector<8x128xf32>
    %320 = vector.shape_cast %316 : vector<8x128xf32> to vector<1x8x128xf32>
    tpu.vector_store %arg6[%317, %c0_87, %c0_88], %320 {strides = array<i32>} : memref<8x8x128xf32, #tpu.memory_space<vmem>>, vector<1x8x128xf32>,
    %c8_i32_89 = arith.constant 8 : i32
    %c0_90 = arith.constant 0 : index
    %c0_91 = arith.constant 0 : index
    %321 = vector.load %arg7[%c0_90, %c0_91] : memref<8x128xf32, #tpu.memory_space<vmem>>, vector<8x128xf32>
    tpu.vector_store %arg7[%c0_90, %c0_91], %316 {strides = array<i32>} : memref<8x128xf32, #tpu.memory_space<vmem>>, vector<8x128xf32>,
    return
  }
  func.func @transform_0(%arg0: i32) -> (i32, i32) {
    %c0_i32 = arith.constant 0 : i32
    %c0_i32_0 = arith.constant 0 : i32
    %c0_i32_1 = arith.constant 0 : i32
    return %c0_i32, %c0_i32_0 : i32, i32
  }
  func.func @transform_1(%arg0: i32) -> (i32, i32) {
    %c0_i32 = arith.constant 0 : i32
    %c0_i32_0 = arith.constant 0 : i32
    %c0_i32_1 = arith.constant 0 : i32
    return %c0_i32, %c0_i32_0 : i32, i32
  }
  func.func @transform_2(%arg0: i32) -> (i32, i32) {
    %c0_i32 = arith.constant 0 : i32
    %c0_i32_0 = arith.constant 0 : i32
    %c0_i32_1 = arith.constant 0 : i32
    return %c0_i32, %c0_i32_0 : i32, i32
  }
  func.func @transform_3(%arg0: i32) -> (i32, i32) {
    %c0_i32 = arith.constant 0 : i32
    %c0_i32_0 = arith.constant 0 : i32
    %c0_i32_1 = arith.constant 0 : i32
    return %c0_i32, %c0_i32_0 : i32, i32
  }
  func.func @transform_4(%arg0: i32) -> (i32, i32) {
    %c0_i32 = arith.constant 0 : i32
    %c0_i32_0 = arith.constant 0 : i32
    %c0_i32_1 = arith.constant 0 : i32
    return %c0_i32, %c0_i32_0 : i32, i32
  }
  func.func @transform_5(%arg0: i32) -> (i32, i32, i32) {
    %c0_i32 = arith.constant 0 : i32
    %c0_i32_0 = arith.constant 0 : i32
    %c0_i32_1 = arith.constant 0 : i32
    %c0_i32_2 = arith.constant 0 : i32
    return %c0_i32, %c0_i32_0, %c0_i32_1 : i32, i32, i32
  }
  func.func @transform_6(%arg0: i32) -> (i32, i32) {
    %c0_i32 = arith.constant 0 : i32
    %c0_i32_0 = arith.constant 0 : i32
    %c0_i32_1 = arith.constant 0 : i32
    return %c0_i32, %c0_i32_0 : i32, i32
  }
}

</mosaic_0001>

<llo_original>
// kernel: tpu_custom_call.1
$region0: #{tpu_custom_call.1}
  #allocation0 [shape = 'u32[]', space=smem, size = 0x4, offset = 0x4, fixed_abs, tag = 'smem constant byte address 0x4 - core index']
  #allocation1 [shape = 'u32[72,128]{1,0:T(1,128)}', space=vmem, size = 0x9000, scoped, tag = 'internal scratch']
  #allocation2 [shape = 'f32[64,384]{1,0:T(8,128)}', space=vmem, size = 0x18000, scoped, tag = 'scratch operand']
  %s0 = inlined_call_operand.hbm [shape: bf16[64,128], index: 0, kind: input, shape index: {}]
  %s1 = inlined_call_operand.hbm [shape: bf16[128,384], index: 1, kind: input, shape index: {}]
  %s2 = inlined_call_operand.hbm [shape: bf16[128,384], index: 2, kind: input, shape index: {}]
  %s3 = inlined_call_operand.hbm [shape: f32[1,384], index: 3, kind: input, shape index: {}]
  %s4 = inlined_call_operand.vmem [shape: f32[1,384], index: 4, kind: input, shape index: {}]
  %s5 = inlined_call_operand.hbm [shape: f32[8,8,128], index: 5, kind: output, shape index: {0}]
  %s6 = inlined_call_operand.hbm [shape: f32[8,128], index: 6, kind: output, shape index: {1}]
  %7 = xla_tuple %s5, %s6
  %s8 = sld [smem:[#allocation0]]
  $region54: #{tpu_custom_call.1} parent=0
    _
  %s10 = ssub.s32 1, %s8
  %s11 = scalar_select 0, %s10, %s8
  $region1: #{tpu_custom_call.1} parent=0
    #allocation3 [shape = 'u8[16384]{0}', space=vmem, size = 0x4000, scoped, tag = 'input window, operand 0, single buffered']
    #allocation4 [shape = 's32[1]{0}', space=sflag, size = 0x4, scoped, tag = 'scoped memory for tpu_custom_call.1']
    #allocation5 [shape = 's32[1]{0}', space=sflag, size = 0x4, scoped, tag = 'scoped memory for tpu_custom_call.1']
    #allocation6 [shape = 'u8[98304]{0}', space=vmem, size = 0x18000, scoped, tag = 'input window, operand 1, single buffered']
    #allocation7 [shape = 's32[1]{0}', space=sflag, size = 0x4, scoped, tag = 'scoped memory for tpu_custom_call.1']
    #allocation8 [shape = 'u8[98304]{0}', space=vmem, size = 0x18000, scoped, tag = 'input window, operand 2, single buffered']
    #allocation9 [shape = 'u8[1536]{0}', space=vmem, size = 0x800, scoped, tag = 'input window, operand 3, single buffered']
    #allocation10 [shape = 's32[1]{0}', space=sflag, size = 0x4, scoped, tag = 'scoped memory for tpu_custom_call.1']
    #allocation11 [shape = 'u8[32768]{0}', space=vmem, size = 0x8000, scoped, tag = 'output window, operand 0, single buffered']
    #allocation12 [shape = 'u8[4096]{0}', space=vmem, size = 0x1000, scoped, tag = 'output window, operand 1, single buffered']
    #allocation13 [shape = 's32[1]{0}', space=sflag, size = 0x4, scoped, tag = 'scoped memory for tpu_custom_call.1']
    %12 = vsyncpa [#allocation4], 0
    %13 = vsyncpa [#allocation7], 0
    %14 = vsyncpa [#allocation10], 0
    %15 = vsyncpa [#allocation5], 0
    %16 = vsyncpa [#allocation13], 0
    // Predicated region
    $region2: #{tpu_custom_call.1} parent=1 // pred_check
      _
    $region3: #{tpu_custom_call.1} parent=1 // pred_check_branch
      %18 = sbr.rel (0) target = $region5
    $region4: #{tpu_custom_call.1} parent=1 // pred_region
      %20 = vsyncadd [#allocation4], 0
      %s21 = sshll.u32 %s0, 4
      %s22 = int_to_ptr.hbm [resolvable:$true] %s21
      %s23 = sshll.u32 [#allocation3], 4
      %s24 = int_to_ptr.vmem [resolvable:$true] %s23
      %29 = dma.hbm_to_vmem [thread:$0]  %s22, 512, %s24, [#allocation4], 64, 64, 4
    $region5: #{tpu_custom_call.1} parent=1 // pred_fallthru
      _
    // Predicated region
    $region6: #{tpu_custom_call.1} parent=1 // pred_check
      _
    $region7: #{tpu_custom_call.1} parent=1 // pred_check_branch
      %31 = sbr.rel (0) target = $region9
    $region8: #{tpu_custom_call.1} parent=1 // pred_region
      %33 = vsyncadd [#allocation7], 0
      %s34 = sshll.u32 %s1, 4
      %s35 = int_to_ptr.hbm [resolvable:$true] %s34
      %s36 = sshll.u32 [#allocation6], 4
      %s37 = int_to_ptr.vmem [resolvable:$true] %s36
      %42 = dma.hbm_to_vmem [thread:$0]  %s35, 3072, %s37, [#allocation7], 192, 192, 12
    $region9: #{tpu_custom_call.1} parent=1 // pred_fallthru
      _
    // Predicated region
    $region10: #{tpu_custom_call.1} parent=1 // pred_check
      _
    $region11: #{tpu_custom_call.1} parent=1 // pred_check_branch
      %44 = sbr.rel (0) target = $region13
    $region12: #{tpu_custom_call.1} parent=1 // pred_region
      %46 = vsyncadd [#allocation7], 0
      %s47 = sshll.u32 %s2, 4
      %s48 = int_to_ptr.hbm [resolvable:$true] %s47
      %s49 = sshll.u32 [#allocation8], 4
      %s50 = int_to_ptr.vmem [resolvable:$true] %s49
      %55 = dma.hbm_to_vmem [thread:$0]  %s48, 3072, %s50, [#allocation7], 192, 192, 12
    $region13: #{tpu_custom_call.1} parent=1 // pred_fallthru
      _
    // Predicated region
    $region14: #{tpu_custom_call.1} parent=1 // pred_check
      _
    $region15: #{tpu_custom_call.1} parent=1 // pred_check_branch
      %57 = sbr.rel (0) target = $region17
    $region16: #{tpu_custom_call.1} parent=1 // pred_region
      %59 = vsyncadd [#allocation10], 0
      %s61 = sshll.u32 %s3, 4
      %s62 = int_to_ptr.hbm [resolvable:$true] %s61
      %s63 = sshll.u32 [#allocation9], 4
      %s64 = int_to_ptr.vmem [resolvable:$true] %s63
      %66 = dma.hbm_to_vmem [thread:$0]  %s62, 48, %s64, [#allocation10]
    $region17: #{tpu_custom_call.1} parent=1 // pred_fallthru
      _
    // Predicated region
    $region18: #{tpu_custom_call.1} parent=1 // pred_check
      _
    $region19: #{tpu_custom_call.1} parent=1 // pred_check_branch
      %68 = sbr.rel (0) target = $region21
    $region20: #{tpu_custom_call.1} parent=1 // pred_region
      _
    $region21: #{tpu_custom_call.1} parent=1 // pred_fallthru
      _
    // Predicated region
    $region22: #{tpu_custom_call.1} parent=1 // pred_check
      _
    $region23: #{tpu_custom_call.1} parent=1 // pred_check_branch
      %70 = sbr.rel (0) target = $region25
    $region24: #{tpu_custom_call.1} parent=1 // pred_region
      %72 = dma.done [#allocation4], 512
    $region25: #{tpu_custom_call.1} parent=1 // pred_fallthru
      _
    // Predicated region
    $region26: #{tpu_custom_call.1} parent=1 // pred_check
      _
    $region27: #{tpu_custom_call.1} parent=1 // pred_check_branch
      %74 = sbr.rel (0) target = $region29
    $region28: #{tpu_custom_call.1} parent=1 // pred_region
      %76 = dma.done [#allocation7], 3072
    $region29: #{tpu_custom_call.1} parent=1 // pred_fallthru
      _
    // Predicated region
    $region30: #{tpu_custom_call.1} parent=1 // pred_check
      _
    $region31: #{tpu_custom_call.1} parent=1 // pred_check_branch
      %78 = sbr.rel (0) target = $region33
    $region32: #{tpu_custom_call.1} parent=1 // pred_region
      %80 = dma.done [#allocation7], 3072
    $region33: #{tpu_custom_call.1} parent=1 // pred_fallthru
      _
    // Predicated region
    $region34: #{tpu_custom_call.1} parent=1 // pred_check
      _
    $region35: #{tpu_custom_call.1} parent=1 // pred_check_branch
      %82 = sbr.rel (0) target = $region37
    $region36: #{tpu_custom_call.1} parent=1 // pred_region
      %84 = dma.done [#allocation10], 48
    $region37: #{tpu_custom_call.1} parent=1 // pred_fallthru
      _
    %v86 = vld [vmem:[%s4] sm:$0x7]
    %v87 = vld [vmem:[#allocation3] sm:$0xf]
    %v88 = vld [vmem:[#allocation3 + $0x4] sm:$0xf]
    %v89 = vld [vmem:[#allocation3 + $0x8] sm:$0xf]
    %v90 = vld [vmem:[#allocation3 + $0xc] sm:$0xf]
    %v91 = vld [vmem:[#allocation3 + $0x10] sm:$0xf]
    %v92 = vld [vmem:[#allocation3 + $0x14] sm:$0xf]
    %v93 = vld [vmem:[#allocation3 + $0x18] sm:$0xf]
    %v94 = vld [vmem:[#allocation3 + $0x1c] sm:$0xf]
    %v95 = vld [vmem:[#allocation6] sm:$0xff]
    %v96 = vld [vmem:[#allocation6 + $0x8] sm:$0xf]
    %v97 = vld [vmem:[#allocation6 + $0xc] sm:$0xff]
    %v98 = vld [vmem:[#allocation6 + $0x14] sm:$0xf]
    %v99 = vld [vmem:[#allocation6 + $0x18] sm:$0xff]
    %v100 = vld [vmem:[#allocation6 + $0x20] sm:$0xf]
    %v101 = vld [vmem:[#allocation6 + $0x24] sm:$0xff]
    %v102 = vld [vmem:[#allocation6 + $0x2c] sm:$0xf]
    %v103 = vld [vmem:[#allocation6 + $0x30] sm:$0xff]
    %v104 = vld [vmem:[#allocation6 + $0x38] sm:$0xf]
    %v105 = vld [vmem:[#allocation6 + $0x3c] sm:$0xff]
    %v106 = vld [vmem:[#allocation6 + $0x44] sm:$0xf]
    %v107 = vld [vmem:[#allocation6 + $0x48] sm:$0xff]
    %v108 = vld [vmem:[#allocation6 + $0x50] sm:$0xf]
    %v109 = vld [vmem:[#allocation6 + $0x54] sm:$0xff]
    %v110 = vld [vmem:[#allocation6 + $0x5c] sm:$0xf]
    %v111 = vld [vmem:[#allocation6 + $0x60] sm:$0xff]
    %v112 = vld [vmem:[#allocation6 + $0x68] sm:$0xf]
    %v113 = vld [vmem:[#allocation6 + $0x6c] sm:$0xff]
    %v114 = vld [vmem:[#allocation6 + $0x74] sm:$0xf]
    %v115 = vld [vmem:[#allocation6 + $0x78] sm:$0xff]
    %v116 = vld [vmem:[#allocation6 + $0x80] sm:$0xf]
    %v117 = vld [vmem:[#allocation6 + $0x84] sm:$0xff]
    %v118 = vld [vmem:[#allocation6 + $0x8c] sm:$0xf]
    %v119 = vld [vmem:[#allocation6 + $0x90] sm:$0xff]
    %v120 = vld [vmem:[#allocation6 + $0x98] sm:$0xf]
    %v121 = vld [vmem:[#allocation6 + $0x9c] sm:$0xff]
    %v122 = vld [vmem:[#allocation6 + $0xa4] sm:$0xf]
    %v123 = vld [vmem:[#allocation6 + $0xa8] sm:$0xff]
    %v124 = vld [vmem:[#allocation6 + $0xb0] sm:$0xf]
    %v125 = vld [vmem:[#allocation6 + $0xb4] sm:$0xff]
    %v126 = vld [vmem:[#allocation6 + $0xbc] sm:$0xf]
    %v127 = vld [vmem:[#allocation9] sm:$0x7]
    %v129 = vperm.slane %v127, 0
    %v130 = vperm.slane %v127, 1
    %v131 = vperm.slane %v127, 2
    %v143 = vunpack.c.l.b16 %v87
    %v144 = vunpack.c.l.b16 %v88
    %v145 = vunpack.c.l.b16 %v89
    %v146 = vunpack.c.l.b16 %v90
    %v147 = vunpack.c.l.b16 %v91
    %v148 = vunpack.c.l.b16 %v92
    %v149 = vunpack.c.l.b16 %v93
    %v150 = vunpack.c.l.b16 %v94
    %v151 = vpack.c.b16 %v144, %v143
    %v152 = vpack.c.b16 %v146, %v145
    %v153 = vpack.c.b16 %v148, %v147
    %v154 = vpack.c.b16 %v150, %v149
    %v191 = vunpack.c.l.b16 %v95
    %v192 = vunpack.c.h.b16 %v95
    %v193 = vunpack.c.l.b16 %v96
    %v194 = vunpack.c.l.b16 %v97
    %v195 = vunpack.c.h.b16 %v97
    %v196 = vunpack.c.l.b16 %v98
    %v197 = vunpack.c.l.b16 %v99
    %v198 = vunpack.c.h.b16 %v99
    %v199 = vunpack.c.l.b16 %v100
    %v200 = vunpack.c.l.b16 %v101
    %v201 = vunpack.c.h.b16 %v101
    %v202 = vunpack.c.l.b16 %v102
    %v203 = vunpack.c.l.b16 %v103
    %v204 = vunpack.c.h.b16 %v103
    %v205 = vunpack.c.l.b16 %v104
    %v206 = vunpack.c.l.b16 %v105
    %v207 = vunpack.c.h.b16 %v105
    %v208 = vunpack.c.l.b16 %v106
    %v209 = vunpack.c.l.b16 %v107
    %v210 = vunpack.c.h.b16 %v107
    %v211 = vunpack.c.l.b16 %v108
    %v212 = vunpack.c.l.b16 %v109
    %v213 = vunpack.c.h.b16 %v109
    %v214 = vunpack.c.l.b16 %v110
    %v215 = vunpack.c.l.b16 %v111
    %v216 = vunpack.c.h.b16 %v111
    %v217 = vunpack.c.l.b16 %v112
    %v218 = vunpack.c.l.b16 %v113
    %v219 = vunpack.c.h.b16 %v113
    %v220 = vunpack.c.l.b16 %v114
    %v221 = vunpack.c.l.b16 %v115
    %v222 = vunpack.c.h.b16 %v115
    %v223 = vunpack.c.l.b16 %v116
    %v224 = vunpack.c.l.b16 %v117
    %v225 = vunpack.c.h.b16 %v117
    %v226 = vunpack.c.l.b16 %v118
    %v227 = vunpack.c.l.b16 %v119
    %v228 = vunpack.c.h.b16 %v119
    %v229 = vunpack.c.l.b16 %v120
    %v230 = vunpack.c.l.b16 %v121
    %v231 = vunpack.c.h.b16 %v121
    %v232 = vunpack.c.l.b16 %v122
    %v233 = vunpack.c.l.b16 %v123
    %v234 = vunpack.c.h.b16 %v123
    %v235 = vunpack.c.l.b16 %v124
    %v236 = vunpack.c.l.b16 %v125
    %v237 = vunpack.c.h.b16 %v125
    %v238 = vunpack.c.l.b16 %v126
    %v239 = vpack.c.b16 %v194, %v191
    %v240 = vpack.c.b16 %v195, %v192
    %v241 = vpack.c.b16 %v196, %v193
    %v242 = vpack.c.b16 %v200, %v197
    %v243 = vpack.c.b16 %v201, %v198
    %v244 = vpack.c.b16 %v202, %v199
    %v245 = vpack.c.b16 %v206, %v203
    %v246 = vpack.c.b16 %v207, %v204
    %v247 = vpack.c.b16 %v208, %v205
    %v248 = vpack.c.b16 %v212, %v209
    %v249 = vpack.c.b16 %v213, %v210
    %v250 = vpack.c.b16 %v214, %v211
    %v251 = vpack.c.b16 %v218, %v215
    %v252 = vpack.c.b16 %v219, %v216
    %v253 = vpack.c.b16 %v220, %v217
    %v254 = vpack.c.b16 %v224, %v221
    %v255 = vpack.c.b16 %v225, %v222
    %v256 = vpack.c.b16 %v226, %v223
    %v257 = vpack.c.b16 %v230, %v227
    %v258 = vpack.c.b16 %v231, %v228
    %v259 = vpack.c.b16 %v232, %v229
    %v260 = vpack.c.b16 %v236, %v233
    %v261 = vpack.c.b16 %v237, %v234
    %v262 = vpack.c.b16 %v238, %v235
    %287 = vmatpush.bf16.msra.mxu0 %v260
    %288 = vmatpush.bf16.msra.mxu0 %v257
    %289 = vmatpush.bf16.msra.mxu0 %v254
    %290 = vmatpush.bf16.msra.mxu0 %v251
    %291 = vmatpush.bf16.msra.mxu0 %v248
    %292 = vmatpush.bf16.msra.mxu0 %v245
    %293 = vmatpush.bf16.msra.mxu0 %v242
    %294 = vmatpush.bf16.msra.mxu0 %v239
    %295 = vmatmul.bf16.gmra.mxu0 %v151
    %v296 = vpop.f32.mrf.mxu0
    %v297 = vadd.f32 %v129, %v296
    %v298 = vpop.f32.mrf.mxu0
    %v299 = vadd.f32 %v129, %v298
    %300 = vmatmul.bf16.gmra.mxu0 %v152
    %v301 = vpop.f32.mrf.mxu0
    %v302 = vadd.f32 %v129, %v301
    %v303 = vpop.f32.mrf.mxu0
    %v304 = vadd.f32 %v129, %v303
    %305 = vmatmul.bf16.gmra.mxu0 %v153
    %v306 = vpop.f32.mrf.mxu0
    %v307 = vadd.f32 %v129, %v306
    %v308 = vpop.f32.mrf.mxu0
    %v309 = vadd.f32 %v129, %v308
    %310 = vmatmul.bf16.gmra.mxu0 %v154
    %v311 = vpop.f32.mrf.mxu0
    %v312 = vadd.f32 %v129, %v311
    %v313 = vpop.f32.mrf.mxu0
    %v314 = vadd.f32 %v129, %v313
    %315 = vdwg.mxu0
    %316 = vmatpush.bf16.msra.mxu0 %v261
    %317 = vmatpush.bf16.msra.mxu0 %v258
    %318 = vmatpush.bf16.msra.mxu0 %v255
    %319 = vmatpush.bf16.msra.mxu0 %v252
    %320 = vmatpush.bf16.msra.mxu0 %v249
    %321 = vmatpush.bf16.msra.mxu0 %v246
    %322 = vmatpush.bf16.msra.mxu0 %v243
    %323 = vmatpush.bf16.msra.mxu0 %v240
    %324 = vmatmul.bf16.gmra.mxu0 %v151
    %v325 = vpop.f32.mrf.mxu0
    %v326 = vadd.f32 %v130, %v325
    %v327 = vpop.f32.mrf.mxu0
    %v328 = vadd.f32 %v130, %v327
    %329 = vmatmul.bf16.gmra.mxu0 %v152
    %v330 = vpop.f32.mrf.mxu0
    %v331 = vadd.f32 %v130, %v330
    %v332 = vpop.f32.mrf.mxu0
    %v333 = vadd.f32 %v130, %v332
    %334 = vmatmul.bf16.gmra.mxu0 %v153
    %v335 = vpop.f32.mrf.mxu0
    %v336 = vadd.f32 %v130, %v335
    %v337 = vpop.f32.mrf.mxu0
    %v338 = vadd.f32 %v130, %v337
    %339 = vmatmul.bf16.gmra.mxu0 %v154
    %v340 = vpop.f32.mrf.mxu0
    %v341 = vadd.f32 %v130, %v340
    %v342 = vpop.f32.mrf.mxu0
    %v343 = vadd.f32 %v130, %v342
    %344 = vdwg.mxu0
    %345 = vmatpush.bf16.msra.mxu0 %v262
    %346 = vmatpush.bf16.msra.mxu0 %v259
    %347 = vmatpush.bf16.msra.mxu0 %v256
    %348 = vmatpush.bf16.msra.mxu0 %v253
    %349 = vmatpush.bf16.msra.mxu0 %v250
    %350 = vmatpush.bf16.msra.mxu0 %v247
    %351 = vmatpush.bf16.msra.mxu0 %v244
    %352 = vmatpush.bf16.msra.mxu0 %v241
    %353 = vmatmul.bf16.gmra.mxu0 %v151
    %v354 = vpop.f32.mrf.mxu0
    %v355 = vadd.f32 %v131, %v354
    %v356 = vpop.f32.mrf.mxu0
    %v357 = vadd.f32 %v131, %v356
    %358 = vmatmul.bf16.gmra.mxu0 %v152
    %v359 = vpop.f32.mrf.mxu0
    %v360 = vadd.f32 %v131, %v359
    %v361 = vpop.f32.mrf.mxu0
    %v362 = vadd.f32 %v131, %v361
    %363 = vmatmul.bf16.gmra.mxu0 %v153
    %v364 = vpop.f32.mrf.mxu0
    %v365 = vadd.f32 %v131, %v364
    %v366 = vpop.f32.mrf.mxu0
    %v367 = vadd.f32 %v131, %v366
    %368 = vmatmul.bf16.gmra.mxu0 %v154
    %v369 = vpop.f32.mrf.mxu0
    %v370 = vadd.f32 %v131, %v369
    %v371 = vpop.f32.mrf.mxu0
    %v372 = vadd.f32 %v131, %v371
    %373 = vdwg.mxu0
    %374 = vst [vmem:[#allocation2] sm:$0xff] %v297
    %375 = vst [vmem:[#allocation2 + $0x8] sm:$0xff] %v326
    %376 = vst [vmem:[#allocation2 + $0x10] sm:$0xff] %v355
    %377 = vst [vmem:[#allocation2 + $0x18] sm:$0xff] %v299
    %378 = vst [vmem:[#allocation2 + $0x20] sm:$0xff] %v328
    %379 = vst [vmem:[#allocation2 + $0x28] sm:$0xff] %v357
    %380 = vst [vmem:[#allocation2 + $0x30] sm:$0xff] %v302
    %381 = vst [vmem:[#allocation2 + $0x38] sm:$0xff] %v331
    %382 = vst [vmem:[#allocation2 + $0x40] sm:$0xff] %v360
    %383 = vst [vmem:[#allocation2 + $0x48] sm:$0xff] %v304
    %384 = vst [vmem:[#allocation2 + $0x50] sm:$0xff] %v333
    %385 = vst [vmem:[#allocation2 + $0x58] sm:$0xff] %v362
    %386 = vst [vmem:[#allocation2 + $0x60] sm:$0xff] %v307
    %387 = vst [vmem:[#allocation2 + $0x68] sm:$0xff] %v336
    %388 = vst [vmem:[#allocation2 + $0x70] sm:$0xff] %v365
    %389 = vst [vmem:[#allocation2 + $0x78] sm:$0xff] %v309
    %390 = vst [vmem:[#allocation2 + $0x80] sm:$0xff] %v338
    %391 = vst [vmem:[#allocation2 + $0x88] sm:$0xff] %v367
    %392 = vst [vmem:[#allocation2 + $0x90] sm:$0xff] %v312
    %393 = vst [vmem:[#allocation2 + $0x98] sm:$0xff] %v341
    %394 = vst [vmem:[#allocation2 + $0xa0] sm:$0xff] %v370
    %395 = vst [vmem:[#allocation2 + $0xa8] sm:$0xff] %v314
    %396 = vst [vmem:[#allocation2 + $0xb0] sm:$0xff] %v343
    %397 = vst [vmem:[#allocation2 + $0xb8] sm:$0xff] %v372
    %s398 = smul.u32 0, 3
    %s399 = smul.addr %s398, 8
    %s400 = scalar_lea.vmem [#allocation2], %s399
    %v401 = vld [vmem:[%s400] sm:$0xff]
    %v402 = vld [vmem:[%s400 + $0x8] sm:$0xff]
    %v403 = vld [vmem:[%s400 + $0x10] sm:$0xff]
    %v404 = vld [vmem:[#allocation8] sm:$0xff]
    %v405 = vld [vmem:[#allocation8 + $0x8] sm:$0xf]
    %v406 = vld [vmem:[#allocation8 + $0xc] sm:$0xff]
    %v407 = vld [vmem:[#allocation8 + $0x14] sm:$0xf]
    %v408 = vld [vmem:[#allocation8 + $0x18] sm:$0xff]
    %v409 = vld [vmem:[#allocation8 + $0x20] sm:$0xf]
    %v410 = vld [vmem:[#allocation8 + $0x24] sm:$0xff]
    %v411 = vld [vmem:[#allocation8 + $0x2c] sm:$0xf]
    %v412 = vld [vmem:[#allocation8 + $0x30] sm:$0xff]
    %v413 = vld [vmem:[#allocation8 + $0x38] sm:$0xf]
    %v414 = vld [vmem:[#allocation8 + $0x3c] sm:$0xff]
    %v415 = vld [vmem:[#allocation8 + $0x44] sm:$0xf]
    %v416 = vld [vmem:[#allocation8 + $0x48] sm:$0xff]
    %v417 = vld [vmem:[#allocation8 + $0x50] sm:$0xf]
    %v418 = vld [vmem:[#allocation8 + $0x54] sm:$0xff]
    %v419 = vld [vmem:[#allocation8 + $0x5c] sm:$0xf]
    %v420 = vld [vmem:[#allocation8 + $0x60] sm:$0xff]
    %v421 = vld [vmem:[#allocation8 + $0x68] sm:$0xf]
    %v422 = vld [vmem:[#allocation8 + $0x6c] sm:$0xff]
    %v423 = vld [vmem:[#allocation8 + $0x74] sm:$0xf]
    %v424 = vld [vmem:[#allocation8 + $0x78] sm:$0xff]
    %v425 = vld [vmem:[#allocation8 + $0x80] sm:$0xf]
    %v426 = vld [vmem:[#allocation8 + $0x84] sm:$0xff]
    %v427 = vld [vmem:[#allocation8 + $0x8c] sm:$0xf]
    %v428 = vld [vmem:[#allocation8 + $0x90] sm:$0xff]
    %v429 = vld [vmem:[#allocation8 + $0x98] sm:$0xf]
    %v430 = vld [vmem:[#allocation8 + $0x9c] sm:$0xff]
    %v431 = vld [vmem:[#allocation8 + $0xa4] sm:$0xf]
    %v432 = vld [vmem:[#allocation8 + $0xa8] sm:$0xff]
    %v433 = vld [vmem:[#allocation8 + $0xb0] sm:$0xf]
    %v434 = vld [vmem:[#allocation8 + $0xb4] sm:$0xff]
    %v435 = vld [vmem:[#allocation8 + $0xbc] sm:$0xf]
    %v437 = vperm.slane %v86, 0
    %v438 = vperm.slane %v86, 1
    %v439 = vperm.slane %v86, 2
    %v475 = vunpack.c.l.b16 %v404
    %v476 = vunpack.c.h.b16 %v404
    %v477 = vunpack.c.l.b16 %v405
    %v478 = vunpack.c.l.b16 %v406
    %v479 = vunpack.c.h.b16 %v406
    %v480 = vunpack.c.l.b16 %v407
    %v481 = vunpack.c.l.b16 %v408
    %v482 = vunpack.c.h.b16 %v408
    %v483 = vunpack.c.l.b16 %v409
    %v484 = vunpack.c.l.b16 %v410
    %v485 = vunpack.c.h.b16 %v410
    %v486 = vunpack.c.l.b16 %v411
    %v487 = vunpack.c.l.b16 %v412
    %v488 = vunpack.c.h.b16 %v412
    %v489 = vunpack.c.l.b16 %v413
    %v490 = vunpack.c.l.b16 %v414
    %v491 = vunpack.c.h.b16 %v414
    %v492 = vunpack.c.l.b16 %v415
    %v493 = vunpack.c.l.b16 %v416
    %v494 = vunpack.c.h.b16 %v416
    %v495 = vunpack.c.l.b16 %v417
    %v496 = vunpack.c.l.b16 %v418
    %v497 = vunpack.c.h.b16 %v418
    %v498 = vunpack.c.l.b16 %v419
    %v499 = vunpack.c.l.b16 %v420
    %v500 = vunpack.c.h.b16 %v420
    %v501 = vunpack.c.l.b16 %v421
    %v502 = vunpack.c.l.b16 %v422
    %v503 = vunpack.c.h.b16 %v422
    %v504 = vunpack.c.l.b16 %v423
    %v505 = vunpack.c.l.b16 %v424
    %v506 = vunpack.c.h.b16 %v424
    %v507 = vunpack.c.l.b16 %v425
    %v508 = vunpack.c.l.b16 %v426
    %v509 = vunpack.c.h.b16 %v426
    %v510 = vunpack.c.l.b16 %v427
    %v511 = vunpack.c.l.b16 %v428
    %v512 = vunpack.c.h.b16 %v428
    %v513 = vunpack.c.l.b16 %v429
    %v514 = vunpack.c.l.b16 %v430
    %v515 = vunpack.c.h.b16 %v430
    %v516 = vunpack.c.l.b16 %v431
    %v517 = vunpack.c.l.b16 %v432
    %v518 = vunpack.c.h.b16 %v432
    %v519 = vunpack.c.l.b16 %v433
    %v520 = vunpack.c.l.b16 %v434
    %v521 = vunpack.c.h.b16 %v434
    %v522 = vunpack.c.l.b16 %v435
    %v523 = vpack.c.b16 %v478, %v475
    %v524 = vpack.c.b16 %v479, %v476
    %v525 = vpack.c.b16 %v480, %v477
    %v526 = vpack.c.b16 %v484, %v481
    %v527 = vpack.c.b16 %v485, %v482
    %v528 = vpack.c.b16 %v486, %v483
    %v529 = vpack.c.b16 %v490, %v487
    %v530 = vpack.c.b16 %v491, %v488
    %v531 = vpack.c.b16 %v492, %v489
    %v532 = vpack.c.b16 %v496, %v493
    %v533 = vpack.c.b16 %v497, %v494
    %v534 = vpack.c.b16 %v498, %v495
    %v535 = vpack.c.b16 %v502, %v499
    %v536 = vpack.c.b16 %v503, %v500
    %v537 = vpack.c.b16 %v504, %v501
    %v538 = vpack.c.b16 %v508, %v505
    %v539 = vpack.c.b16 %v509, %v506
    %v540 = vpack.c.b16 %v510, %v507
    %v541 = vpack.c.b16 %v514, %v511
    %v542 = vpack.c.b16 %v515, %v512
    %v543 = vpack.c.b16 %v516, %v513
    %v544 = vpack.c.b16 %v520, %v517
    %v545 = vpack.c.b16 %v521, %v518
    %v546 = vpack.c.b16 %v522, %v519
    %571 = vmatpush.bf16.msra.mxu0 %v544
    %572 = vmatpush.bf16.msra.mxu0 %v541
    %573 = vmatpush.bf16.msra.mxu0 %v538
    %574 = vmatpush.bf16.msra.mxu0 %v535
    %575 = vmatpush.bf16.msra.mxu0 %v532
    %576 = vmatpush.bf16.msra.mxu0 %v529
    %577 = vmatpush.bf16.msra.mxu0 %v526
    %578 = vmatpush.bf16.msra.mxu0 %v523
    %579 = vmatmul.bf16.gmra.mxu0 0
    %v580 = vpop.f32.mrf.mxu0
    %v581 = vadd.f32 %v437, %v580
    %v582 = vpop.f32.mrf.mxu0
    %583 = vdwg.mxu0
    %584 = vmatpush.bf16.msra.mxu0 %v545
    %585 = vmatpush.bf16.msra.mxu0 %v542
    %586 = vmatpush.bf16.msra.mxu0 %v539
    %587 = vmatpush.bf16.msra.mxu0 %v536
    %588 = vmatpush.bf16.msra.mxu0 %v533
    %589 = vmatpush.bf16.msra.mxu0 %v530
    %590 = vmatpush.bf16.msra.mxu0 %v527
    %591 = vmatpush.bf16.msra.mxu0 %v524
    %592 = vmatmul.bf16.gmra.mxu0 0
    %v593 = vpop.f32.mrf.mxu0
    %v594 = vadd.f32 %v438, %v593
    %v595 = vpop.f32.mrf.mxu0
    %596 = vdwg.mxu0
    %597 = vmatpush.bf16.msra.mxu0 %v546
    %598 = vmatpush.bf16.msra.mxu0 %v543
    %599 = vmatpush.bf16.msra.mxu0 %v540
    %600 = vmatpush.bf16.msra.mxu0 %v537
    %601 = vmatpush.bf16.msra.mxu0 %v534
    %602 = vmatpush.bf16.msra.mxu0 %v531
    %603 = vmatpush.bf16.msra.mxu0 %v528
    %604 = vmatpush.bf16.msra.mxu0 %v525
    %605 = vmatmul.bf16.gmra.mxu0 0
    %v606 = vpop.f32.mrf.mxu0
    %v607 = vadd.f32 %v439, %v606
    %v608 = vpop.f32.mrf.mxu0
    %609 = vdwg.mxu0
    %v610 = vadd.f32 %v401, %v581
    %v611 = vxor.u32 %v610, 2147483648
    %v612 = vmul.f32 %v611, 1.442695
    %v613 = vpow.pop %v612
    %v614 = vadd.f32 %v613, 1.0
    %v615 = vrcp.pop %v614
    %v616 = vmul.f32 %v614, %v615
    %v617 = vsub.f32 1.0, %v616
    %v618 = vmul.f32 %v615, %v617
    %v619 = vadd.f32 %v615, %v618
    %vm620 = vweird.f32 %v614
    %vm621 = vweird.f32 %v615
    %vm622 = vmor %vm620, %vm621
    %v623 = vsel %vm622, %v615, %v619
    %v624 = vand.u32 2147483647, %v614
    %vm625 = vcmp.eq.f32.partialorder %v624, 8.507059e+37
    %v626 = vand.u32 %v614, 2147483648
    %v627 = vor.u32 1.1754944e-38, %v626
    %v628 = vsel %vm625, %v627, %v623
    %v629 = vmul.f32 1.0, %v628
    %v630 = vadd.f32 %v402, %v594
    %v631 = vxor.u32 %v630, 2147483648
    %v632 = vmul.f32 %v631, 1.442695
    %v633 = vpow.pop %v632
    %v634 = vadd.f32 %v633, 1.0
    %v635 = vrcp.pop %v634
    %v636 = vmul.f32 %v634, %v635
    %v637 = vsub.f32 1.0, %v636
    %v638 = vmul.f32 %v635, %v637
    %v639 = vadd.f32 %v635, %v638
    %vm640 = vweird.f32 %v634
    %vm641 = vweird.f32 %v635
    %vm642 = vmor %vm640, %vm641
    %v643 = vsel %vm642, %v635, %v639
    %v644 = vand.u32 2147483647, %v634
    %vm645 = vcmp.eq.f32.partialorder %v644, 8.507059e+37
    %v646 = vand.u32 %v634, 2147483648
    %v647 = vor.u32 1.1754944e-38, %v646
    %v648 = vsel %vm645, %v647, %v643
    %v649 = vmul.f32 1.0, %v648
    %v650 = vmul.f32 %v629, %v607
    %v651 = vadd.f32 %v403, %v650
    %v652 = vtanh.pop %v651
    %v653 = vsub.f32 1.0, %v649
    %v654 = vmul.f32 %v653, %v652
    %v655 = vmul.f32 %v649, 0.0
    %v656 = vadd.f32 %v654, %v655
    %657 = vst [vmem:[#allocation11] sm:$0xff] %v656
    %s658 = smul.u32 1, 3
    %s659 = smul.addr %s658, 8
    %s660 = scalar_lea.vmem [#allocation2], %s659
    %v661 = vld [vmem:[%s660] sm:$0xff]
    %v662 = vld [vmem:[%s660 + $0x8] sm:$0xff]
    %v663 = vld [vmem:[%s660 + $0x10] sm:$0xff]
    %v664 = vpack.c.bf16 %v656, %v656
    %v665 = vld [vmem:[#allocation8] sm:$0xff]
    %v666 = vld [vmem:[#allocation8 + $0x8] sm:$0xf]
    %v667 = vld [vmem:[#allocation8 + $0xc] sm:$0xff]
    %v668 = vld [vmem:[#allocation8 + $0x14] sm:$0xf]
    %v669 = vld [vmem:[#allocation8 + $0x18] sm:$0xff]
    %v670 = vld [vmem:[#allocation8 + $0x20] sm:$0xf]
    %v671 = vld [vmem:[#allocation8 + $0x24] sm:$0xff]
    %v672 = vld [vmem:[#allocation8 + $0x2c] sm:$0xf]
    %v673 = vld [vmem:[#allocation8 + $0x30] sm:$0xff]
    %v674 = vld [vmem:[#allocation8 + $0x38] sm:$0xf]
    %v675 = vld [vmem:[#allocation8 + $0x3c] sm:$0xff]
    %v676 = vld [vmem:[#allocation8 + $0x44] sm:$0xf]
    %v677 = vld [vmem:[#allocation8 + $0x48] sm:$0xff]
    %v678 = vld [vmem:[#allocation8 + $0x50] sm:$0xf]
    %v679 = vld [vmem:[#allocation8 + $0x54] sm:$0xff]
    %v680 = vld [vmem:[#allocation8 + $0x5c] sm:$0xf]
    %v681 = vld [vmem:[#allocation8 + $0x60] sm:$0xff]
    %v682 = vld [vmem:[#allocation8 + $0x68] sm:$0xf]
    %v683 = vld [vmem:[#allocation8 + $0x6c] sm:$0xff]
    %v684 = vld [vmem:[#allocation8 + $0x74] sm:$0xf]
    %v685 = vld [vmem:[#allocation8 + $0x78] sm:$0xff]
    %v686 = vld [vmem:[#allocation8 + $0x80] sm:$0xf]
    %v687 = vld [vmem:[#allocation8 + $0x84] sm:$0xff]
    %v688 = vld [vmem:[#allocation8 + $0x8c] sm:$0xf]
    %v689 = vld [vmem:[#allocation8 + $0x90] sm:$0xff]
    %v690 = vld [vmem:[#allocation8 + $0x98] sm:$0xf]
    %v691 = vld [vmem:[#allocation8 + $0x9c] sm:$0xff]
    %v692 = vld [vmem:[#allocation8 + $0xa4] sm:$0xf]
    %v693 = vld [vmem:[#allocation8 + $0xa8] sm:$0xff]
    %v694 = vld [vmem:[#allocation8 + $0xb0] sm:$0xf]
    %v695 = vld [vmem:[#allocation8 + $0xb4] sm:$0xff]
    %v696 = vld [vmem:[#allocation8 + $0xbc] sm:$0xf]
    %v729 = vunpack.c.l.b16 %v665
    %v730 = vunpack.c.h.b16 %v665
    %v731 = vunpack.c.l.b16 %v666
    %v732 = vunpack.c.l.b16 %v667
    %v733 = vunpack.c.h.b16 %v667
    %v734 = vunpack.c.l.b16 %v668
    %v735 = vunpack.c.l.b16 %v669
    %v736 = vunpack.c.h.b16 %v669
    %v737 = vunpack.c.l.b16 %v670
    %v738 = vunpack.c.l.b16 %v671
    %v739 = vunpack.c.h.b16 %v671
    %v740 = vunpack.c.l.b16 %v672
    %v741 = vunpack.c.l.b16 %v673
    %v742 = vunpack.c.h.b16 %v673
    %v743 = vunpack.c.l.b16 %v674
    %v744 = vunpack.c.l.b16 %v675
    %v745 = vunpack.c.h.b16 %v675
    %v746 = vunpack.c.l.b16 %v676
    %v747 = vunpack.c.l.b16 %v677
    %v748 = vunpack.c.h.b16 %v677
    %v749 = vunpack.c.l.b16 %v678
    %v750 = vunpack.c.l.b16 %v679
    %v751 = vunpack.c.h.b16 %v679
    %v752 = vunpack.c.l.b16 %v680
    %v753 = vunpack.c.l.b16 %v681
    %v754 = vunpack.c.h.b16 %v681
    %v755 = vunpack.c.l.b16 %v682
    %v756 = vunpack.c.l.b16 %v683
    %v757 = vunpack.c.h.b16 %v683
    %v758 = vunpack.c.l.b16 %v684
    %v759 = vunpack.c.l.b16 %v685
    %v760 = vunpack.c.h.b16 %v685
    %v761 = vunpack.c.l.b16 %v686
    %v762 = vunpack.c.l.b16 %v687
    %v763 = vunpack.c.h.b16 %v687
    %v764 = vunpack.c.l.b16 %v688
    %v765 = vunpack.c.l.b16 %v689
    %v766 = vunpack.c.h.b16 %v689
    %v767 = vunpack.c.l.b16 %v690
    %v768 = vunpack.c.l.b16 %v691
    %v769 = vunpack.c.h.b16 %v691
    %v770 = vunpack.c.l.b16 %v692
    %v771 = vunpack.c.l.b16 %v693
    %v772 = vunpack.c.h.b16 %v693
    %v773 = vunpack.c.l.b16 %v694
    %v774 = vunpack.c.l.b16 %v695
    %v775 = vunpack.c.h.b16 %v695
    %v776 = vunpack.c.l.b16 %v696
    %v777 = vpack.c.b16 %v732, %v729
    %v778 = vpack.c.b16 %v733, %v730
    %v779 = vpack.c.b16 %v734, %v731
    %v780 = vpack.c.b16 %v738, %v735
    %v781 = vpack.c.b16 %v739, %v736
    %v782 = vpack.c.b16 %v740, %v737
    %v783 = vpack.c.b16 %v744, %v741
    %v784 = vpack.c.b16 %v745, %v742
    %v785 = vpack.c.b16 %v746, %v743
    %v786 = vpack.c.b16 %v750, %v747
    %v787 = vpack.c.b16 %v751, %v748
    %v788 = vpack.c.b16 %v752, %v749
    %v789 = vpack.c.b16 %v756, %v753
    %v790 = vpack.c.b16 %v757, %v754
    %v791 = vpack.c.b16 %v758, %v755
    %v792 = vpack.c.b16 %v762, %v759
    %v793 = vpack.c.b16 %v763, %v760
    %v794 = vpack.c.b16 %v764, %v761
    %v795 = vpack.c.b16 %v768, %v765
    %v796 = vpack.c.b16 %v769, %v766
    %v797 = vpack.c.b16 %v770, %v767
    %v798 = vpack.c.b16 %v774, %v771
    %v799 = vpack.c.b16 %v775, %v772
    %v800 = vpack.c.b16 %v776, %v773
    %825 = vmatpush.bf16.msra.mxu0 %v798
    %826 = vmatpush.bf16.msra.mxu0 %v795
    %827 = vmatpush.bf16.msra.mxu0 %v792
    %828 = vmatpush.bf16.msra.mxu0 %v789
    %829 = vmatpush.bf16.msra.mxu0 %v786
    %830 = vmatpush.bf16.msra.mxu0 %v783
    %831 = vmatpush.bf16.msra.mxu0 %v780
    %832 = vmatpush.bf16.msra.mxu0 %v777
    %833 = vmatmul.bf16.gmra.mxu0 %v664
    %v834 = vpop.f32.mrf.mxu0
    %v835 = vadd.f32 %v437, %v834
    %v836 = vpop.f32.mrf.mxu0
    %837 = vdwg.mxu0
    %838 = vmatpush.bf16.msra.mxu0 %v799
    %839 = vmatpush.bf16.msra.mxu0 %v796
    %840 = vmatpush.bf16.msra.mxu0 %v793
    %841 = vmatpush.bf16.msra.mxu0 %v790
    %842 = vmatpush.bf16.msra.mxu0 %v787
    %843 = vmatpush.bf16.msra.mxu0 %v784
    %844 = vmatpush.bf16.msra.mxu0 %v781
    %845 = vmatpush.bf16.msra.mxu0 %v778
    %846 = vmatmul.bf16.gmra.mxu0 %v664
    %v847 = vpop.f32.mrf.mxu0
    %v848 = vadd.f32 %v438, %v847
    %v849 = vpop.f32.mrf.mxu0
    %850 = vdwg.mxu0
    %851 = vmatpush.bf16.msra.mxu0 %v800
    %852 = vmatpush.bf16.msra.mxu0 %v797
    %853 = vmatpush.bf16.msra.mxu0 %v794
    %854 = vmatpush.bf16.msra.mxu0 %v791
    %855 = vmatpush.bf16.msra.mxu0 %v788
    %856 = vmatpush.bf16.msra.mxu0 %v785
    %857 = vmatpush.bf16.msra.mxu0 %v782
    %858 = vmatpush.bf16.msra.mxu0 %v779
    %859 = vmatmul.bf16.gmra.mxu0 %v664
    %v860 = vpop.f32.mrf.mxu0
    %v861 = vadd.f32 %v439, %v860
    %v862 = vpop.f32.mrf.mxu0
    %863 = vdwg.mxu0
    %v864 = vadd.f32 %v661, %v835
    %v865 = vxor.u32 %v864, 2147483648
    %v866 = vmul.f32 %v865, 1.442695
    %v867 = vpow.pop %v866
    %v868 = vadd.f32 %v867, 1.0
    %v869 = vrcp.pop %v868
    %v870 = vmul.f32 %v868, %v869
    %v871 = vsub.f32 1.0, %v870
    %v872 = vmul.f32 %v869, %v871
    %v873 = vadd.f32 %v869, %v872
    %vm874 = vweird.f32 %v868
    %vm875 = vweird.f32 %v869
    %vm876 = vmor %vm874, %vm875
    %v877 = vsel %vm876, %v869, %v873
    %v878 = vand.u32 2147483647, %v868
    %vm879 = vcmp.eq.f32.partialorder %v878, 8.507059e+37
    %v880 = vand.u32 %v868, 2147483648
    %v881 = vor.u32 1.1754944e-38, %v880
    %v882 = vsel %vm879, %v881, %v877
    %v883 = vmul.f32 1.0, %v882
    %v884 = vadd.f32 %v662, %v848
    %v885 = vxor.u32 %v884, 2147483648
    %v886 = vmul.f32 %v885, 1.442695
    %v887 = vpow.pop %v886
    %v888 = vadd.f32 %v887, 1.0
    %v889 = vrcp.pop %v888
    %v890 = vmul.f32 %v888, %v889
    %v891 = vsub.f32 1.0, %v890
    %v892 = vmul.f32 %v889, %v891
    %v893 = vadd.f32 %v889, %v892
    %vm894 = vweird.f32 %v888
    %vm895 = vweird.f32 %v889
    %vm896 = vmor %vm894, %vm895
    %v897 = vsel %vm896, %v889, %v893
    %v898 = vand.u32 2147483647, %v888
    %vm899 = vcmp.eq.f32.partialorder %v898, 8.507059e+37
    %v900 = vand.u32 %v888, 2147483648
    %v901 = vor.u32 1.1754944e-38, %v900
    %v902 = vsel %vm899, %v901, %v897
    %v903 = vmul.f32 1.0, %v902
    %v904 = vmul.f32 %v883, %v861
    %v905 = vadd.f32 %v663, %v904
    %v906 = vtanh.pop %v905
    %v907 = vsub.f32 1.0, %v903
    %v908 = vmul.f32 %v907, %v906
    %v909 = vmul.f32 %v903, %v656
    %v910 = vadd.f32 %v908, %v909
    %s911 = scalar_lea.vmem [#allocation11], 8
    %912 = vst [vmem:[%s911] sm:$0xff] %v910
    %s913 = smul.u32 2, 3
    %s914 = smul.addr %s913, 8
    %s915 = scalar_lea.vmem [#allocation2], %s914
    %v916 = vld [vmem:[%s915] sm:$0xff]
    %v917 = vld [vmem:[%s915 + $0x8] sm:$0xff]
    %v918 = vld [vmem:[%s915 + $0x10] sm:$0xff]
    %v919 = vpack.c.bf16 %v910, %v910
    %v920 = vld [vmem:[#allocation8] sm:$0xff]
    %v921 = vld [vmem:[#allocation8 + $0x8] sm:$0xf]
    %v922 = vld [vmem:[#allocation8 + $0xc] sm:$0xff]
    %v923 = vld [vmem:[#allocation8 + $0x14] sm:$0xf]
    %v924 = vld [vmem:[#allocation8 + $0x18] sm:$0xff]
    %v925 = vld [vmem:[#allocation8 + $0x20] sm:$0xf]
    %v926 = vld [vmem:[#allocation8 + $0x24] sm:$0xff]
    %v927 = vld [vmem:[#allocation8 + $0x2c] sm:$0xf]
    %v928 = vld [vmem:[#allocation8 + $0x30] sm:$0xff]
    %v929 = vld [vmem:[#allocation8 + $0x38] sm:$0xf]
    %v930 = vld [vmem:[#allocation8 + $0x3c] sm:$0xff]
    %v931 = vld [vmem:[#allocation8 + $0x44] sm:$0xf]
    %v932 = vld [vmem:[#allocation8 + $0x48] sm:$0xff]
    %v933 = vld [vmem:[#allocation8 + $0x50] sm:$0xf]
    %v934 = vld [vmem:[#allocation8 + $0x54] sm:$0xff]
    %v935 = vld [vmem:[#allocation8 + $0x5c] sm:$0xf]
    %v936 = vld [vmem:[#allocation8 + $0x60] sm:$0xff]
    %v937 = vld [vmem:[#allocation8 + $0x68] sm:$0xf]
    %v938 = vld [vmem:[#allocation8 + $0x6c] sm:$0xff]
    %v939 = vld [vmem:[#allocation8 + $0x74] sm:$0xf]
    %v940 = vld [vmem:[#allocation8 + $0x78] sm:$0xff]
    %v941 = vld [vmem:[#allocation8 + $0x80] sm:$0xf]
    %v942 = vld [vmem:[#allocation8 + $0x84] sm:$0xff]
    %v943 = vld [vmem:[#allocation8 + $0x8c] sm:$0xf]
    %v944 = vld [vmem:[#allocation8 + $0x90] sm:$0xff]
    %v945 = vld [vmem:[#allocation8 + $0x98] sm:$0xf]
    %v946 = vld [vmem:[#allocation8 + $0x9c] sm:$0xff]
    %v947 = vld [vmem:[#allocation8 + $0xa4] sm:$0xf]
    %v948 = vld [vmem:[#allocation8 + $0xa8] sm:$0xff]
    %v949 = vld [vmem:[#allocation8 + $0xb0] sm:$0xf]
    %v950 = vld [vmem:[#allocation8 + $0xb4] sm:$0xff]
    %v951 = vld [vmem:[#allocation8 + $0xbc] sm:$0xf]
    %v984 = vunpack.c.l.b16 %v920
    %v985 = vunpack.c.h.b16 %v920
    %v986 = vunpack.c.l.b16 %v921
    %v987 = vunpack.c.l.b16 %v922
    %v988 = vunpack.c.h.b16 %v922
    %v989 = vunpack.c.l.b16 %v923
    %v990 = vunpack.c.l.b16 %v924
    %v991 = vunpack.c.h.b16 %v924
    %v992 = vunpack.c.l.b16 %v925
    %v993 = vunpack.c.l.b16 %v926
    %v994 = vunpack.c.h.b16 %v926
    %v995 = vunpack.c.l.b16 %v927
    %v996 = vunpack.c.l.b16 %v928
    %v997 = vunpack.c.h.b16 %v928
    %v998 = vunpack.c.l.b16 %v929
    %v999 = vunpack.c.l.b16 %v930
    %v1000 = vunpack.c.h.b16 %v930
    %v1001 = vunpack.c.l.b16 %v931
    %v1002 = vunpack.c.l.b16 %v932
    %v1003 = vunpack.c.h.b16 %v932
    %v1004 = vunpack.c.l.b16 %v933
    %v1005 = vunpack.c.l.b16 %v934
    %v1006 = vunpack.c.h.b16 %v934
    %v1007 = vunpack.c.l.b16 %v935
    %v1008 = vunpack.c.l.b16 %v936
    %v1009 = vunpack.c.h.b16 %v936
    %v1010 = vunpack.c.l.b16 %v937
    %v1011 = vunpack.c.l.b16 %v938
    %v1012 = vunpack.c.h.b16 %v938
    %v1013 = vunpack.c.l.b16 %v939
    %v1014 = vunpack.c.l.b16 %v940
    %v1015 = vunpack.c.h.b16 %v940
    %v1016 = vunpack.c.l.b16 %v941
    %v1017 = vunpack.c.l.b16 %v942
    %v1018 = vunpack.c.h.b16 %v942
    %v1019 = vunpack.c.l.b16 %v943
    %v1020 = vunpack.c.l.b16 %v944
    %v1021 = vunpack.c.h.b16 %v944
    %v1022 = vunpack.c.l.b16 %v945
    %v1023 = vunpack.c.l.b16 %v946
    %v1024 = vunpack.c.h.b16 %v946
    %v1025 = vunpack.c.l.b16 %v947
    %v1026 = vunpack.c.l.b16 %v948
    %v1027 = vunpack.c.h.b16 %v948
    %v1028 = vunpack.c.l.b16 %v949
    %v1029 = vunpack.c.l.b16 %v950
    %v1030 = vunpack.c.h.b16 %v950
    %v1031 = vunpack.c.l.b16 %v951
    %v1032 = vpack.c.b16 %v987, %v984
    %v1033 = vpack.c.b16 %v988, %v985
    %v1034 = vpack.c.b16 %v989, %v986
    %v1035 = vpack.c.b16 %v993, %v990
    %v1036 = vpack.c.b16 %v994, %v991
    %v1037 = vpack.c.b16 %v995, %v992
    %v1038 = vpack.c.b16 %v999, %v996
    %v1039 = vpack.c.b16 %v1000, %v997
    %v1040 = vpack.c.b16 %v1001, %v998
    %v1041 = vpack.c.b16 %v1005, %v1002
    %v1042 = vpack.c.b16 %v1006, %v1003
    %v1043 = vpack.c.b16 %v1007, %v1004
    %v1044 = vpack.c.b16 %v1011, %v1008
    %v1045 = vpack.c.b16 %v1012, %v1009
    %v1046 = vpack.c.b16 %v1013, %v1010
    %v1047 = vpack.c.b16 %v1017, %v1014
    %v1048 = vpack.c.b16 %v1018, %v1015
    %v1049 = vpack.c.b16 %v1019, %v1016
    %v1050 = vpack.c.b16 %v1023, %v1020
    %v1051 = vpack.c.b16 %v1024, %v1021
    %v1052 = vpack.c.b16 %v1025, %v1022
    %v1053 = vpack.c.b16 %v1029, %v1026
    %v1054 = vpack.c.b16 %v1030, %v1027
    %v1055 = vpack.c.b16 %v1031, %v1028
    %1080 = vmatpush.bf16.msra.mxu0 %v1053
    %1081 = vmatpush.bf16.msra.mxu0 %v1050
    %1082 = vmatpush.bf16.msra.mxu0 %v1047
    %1083 = vmatpush.bf16.msra.mxu0 %v1044
    %1084 = vmatpush.bf16.msra.mxu0 %v1041
    %1085 = vmatpush.bf16.msra.mxu0 %v1038
    %1086 = vmatpush.bf16.msra.mxu0 %v1035
    %1087 = vmatpush.bf16.msra.mxu0 %v1032
    %1088 = vmatmul.bf16.gmra.mxu0 %v919
    %v1089 = vpop.f32.mrf.mxu0
    %v1090 = vadd.f32 %v437, %v1089
    %v1091 = vpop.f32.mrf.mxu0
    %1092 = vdwg.mxu0
    %1093 = vmatpush.bf16.msra.mxu0 %v1054
    %1094 = vmatpush.bf16.msra.mxu0 %v1051
    %1095 = vmatpush.bf16.msra.mxu0 %v1048
    %1096 = vmatpush.bf16.msra.mxu0 %v1045
    %1097 = vmatpush.bf16.msra.mxu0 %v1042
    %1098 = vmatpush.bf16.msra.mxu0 %v1039
    %1099 = vmatpush.bf16.msra.mxu0 %v1036
    %1100 = vmatpush.bf16.msra.mxu0 %v1033
    %1101 = vmatmul.bf16.gmra.mxu0 %v919
    %v1102 = vpop.f32.mrf.mxu0
    %v1103 = vadd.f32 %v438, %v1102
    %v1104 = vpop.f32.mrf.mxu0
    %1105 = vdwg.mxu0
    %1106 = vmatpush.bf16.msra.mxu0 %v1055
    %1107 = vmatpush.bf16.msra.mxu0 %v1052
    %1108 = vmatpush.bf16.msra.mxu0 %v1049
    %1109 = vmatpush.bf16.msra.mxu0 %v1046
    %1110 = vmatpush.bf16.msra.mxu0 %v1043
    %1111 = vmatpush.bf16.msra.mxu0 %v1040
    %1112 = vmatpush.bf16.msra.mxu0 %v1037
    %1113 = vmatpush.bf16.msra.mxu0 %v1034
    %1114 = vmatmul.bf16.gmra.mxu0 %v919
    %v1115 = vpop.f32.mrf.mxu0
    %v1116 = vadd.f32 %v439, %v1115
    %v1117 = vpop.f32.mrf.mxu0
    %1118 = vdwg.mxu0
    %v1119 = vadd.f32 %v916, %v1090
    %v1120 = vxor.u32 %v1119, 2147483648
    %v1121 = vmul.f32 %v1120, 1.442695
    %v1122 = vpow.pop %v1121
    %v1123 = vadd.f32 %v1122, 1.0
    %v1124 = vrcp.pop %v1123
    %v1125 = vmul.f32 %v1123, %v1124
    %v1126 = vsub.f32 1.0, %v1125
    %v1127 = vmul.f32 %v1124, %v1126
    %v1128 = vadd.f32 %v1124, %v1127
    %vm1129 = vweird.f32 %v1123
    %vm1130 = vweird.f32 %v1124
    %vm1131 = vmor %vm1129, %vm1130
    %v1132 = vsel %vm1131, %v1124, %v1128
    %v1133 = vand.u32 2147483647, %v1123
    %vm1134 = vcmp.eq.f32.partialorder %v1133, 8.507059e+37
    %v1135 = vand.u32 %v1123, 2147483648
    %v1136 = vor.u32 1.1754944e-38, %v1135
    %v1137 = vsel %vm1134, %v1136, %v1132
    %v1138 = vmul.f32 1.0, %v1137
    %v1139 = vadd.f32 %v917, %v1103
    %v1140 = vxor.u32 %v1139, 2147483648
    %v1141 = vmul.f32 %v1140, 1.442695
    %v1142 = vpow.pop %v1141
    %v1143 = vadd.f32 %v1142, 1.0
    %v1144 = vrcp.pop %v1143
    %v1145 = vmul.f32 %v1143, %v1144
    %v1146 = vsub.f32 1.0, %v1145
    %v1147 = vmul.f32 %v1144, %v1146
    %v1148 = vadd.f32 %v1144, %v1147
    %vm1149 = vweird.f32 %v1143
    %vm1150 = vweird.f32 %v1144
    %vm1151 = vmor %vm1149, %vm1150
    %v1152 = vsel %vm1151, %v1144, %v1148
    %v1153 = vand.u32 2147483647, %v1143
    %vm1154 = vcmp.eq.f32.partialorder %v1153, 8.507059e+37
    %v1155 = vand.u32 %v1143, 2147483648
    %v1156 = vor.u32 1.1754944e-38, %v1155
    %v1157 = vsel %vm1154, %v1156, %v1152
    %v1158 = vmul.f32 1.0, %v1157
    %v1159 = vmul.f32 %v1138, %v1116
    %v1160 = vadd.f32 %v918, %v1159
    %v1161 = vtanh.pop %v1160
    %v1162 = vsub.f32 1.0, %v1158
    %v1163 = vmul.f32 %v1162, %v1161
    %v1164 = vmul.f32 %v1158, %v910
    %v1165 = vadd.f32 %v1163, %v1164
    %s1166 = scalar_lea.vmem [#allocation11], 16
    %1167 = vst [vmem:[%s1166] sm:$0xff] %v1165
    %s1168 = smul.u32 3, 3
    %s1169 = smul.addr %s1168, 8
    %s1170 = scalar_lea.vmem [#allocation2], %s1169
    %v1171 = vld [vmem:[%s1170] sm:$0xff]
    %v1172 = vld [vmem:[%s1170 + $0x8] sm:$0xff]
    %v1173 = vld [vmem:[%s1170 + $0x10] sm:$0xff]
    %v1174 = vpack.c.bf16 %v1165, %v1165
    %v1175 = vld [vmem:[#allocation8] sm:$0xff]
    %v1176 = vld [vmem:[#allocation8 + $0x8] sm:$0xf]
    %v1177 = vld [vmem:[#allocation8 + $0xc] sm:$0xff]
    %v1178 = vld [vmem:[#allocation8 + $0x14] sm:$0xf]
    %v1179 = vld [vmem:[#allocation8 + $0x18] sm:$0xff]
    %v1180 = vld [vmem:[#allocation8 + $0x20] sm:$0xf]
    %v1181 = vld [vmem:[#allocation8 + $0x24] sm:$0xff]
    %v1182 = vld [vmem:[#allocation8 + $0x2c] sm:$0xf]
    %v1183 = vld [vmem:[#allocation8 + $0x30] sm:$0xff]
    %v1184 = vld [vmem:[#allocation8 + $0x38] sm:$0xf]
    %v1185 = vld [vmem:[#allocation8 + $0x3c] sm:$0xff]
    %v1186 = vld [vmem:[#allocation8 + $0x44] sm:$0xf]
    %v1187 = vld [vmem:[#allocation8 + $0x48] sm:$0xff]
    %v1188 = vld [vmem:[#allocation8 + $0x50] sm:$0xf]
    %v1189 = vld [vmem:[#allocation8 + $0x54] sm:$0xff]
    %v1190 = vld [vmem:[#allocation8 + $0x5c] sm:$0xf]
    %v1191 = vld [vmem:[#allocation8 + $0x60] sm:$0xff]
    %v1192 = vld [vmem:[#allocation8 + $0x68] sm:$0xf]
    %v1193 = vld [vmem:[#allocation8 + $0x6c] sm:$0xff]
    %v1194 = vld [vmem:[#allocation8 + $0x74] sm:$0xf]
    %v1195 = vld [vmem:[#allocation8 + $0x78] sm:$0xff]
    %v1196 = vld [vmem:[#allocation8 + $0x80] sm:$0xf]
    %v1197 = vld [vmem:[#allocation8 + $0x84] sm:$0xff]
    %v1198 = vld [vmem:[#allocation8 + $0x8c] sm:$0xf]
    %v1199 = vld [vmem:[#allocation8 + $0x90] sm:$0xff]
    %v1200 = vld [vmem:[#allocation8 + $0x98] sm:$0xf]
    %v1201 = vld [vmem:[#allocation8 + $0x9c] sm:$0xff]
    %v1202 = vld [vmem:[#allocation8 + $0xa4] sm:$0xf]
    %v1203 = vld [vmem:[#allocation8 + $0xa8] sm:$0xff]
    %v1204 = vld [vmem:[#allocation8 + $0xb0] sm:$0xf]
    %v1205 = vld [vmem:[#allocation8 + $0xb4] sm:$0xff]
    %v1206 = vld [vmem:[#allocation8 + $0xbc] sm:$0xf]
    %v1239 = vunpack.c.l.b16 %v1175
    %v1240 = vunpack.c.h.b16 %v1175
    %v1241 = vunpack.c.l.b16 %v1176
    %v1242 = vunpack.c.l.b16 %v1177
    %v1243 = vunpack.c.h.b16 %v1177
    %v1244 = vunpack.c.l.b16 %v1178
    %v1245 = vunpack.c.l.b16 %v1179
    %v1246 = vunpack.c.h.b16 %v1179
    %v1247 = vunpack.c.l.b16 %v1180
    %v1248 = vunpack.c.l.b16 %v1181
    %v1249 = vunpack.c.h.b16 %v1181
    %v1250 = vunpack.c.l.b16 %v1182
    %v1251 = vunpack.c.l.b16 %v1183
    %v1252 = vunpack.c.h.b16 %v1183
    %v1253 = vunpack.c.l.b16 %v1184
    %v1254 = vunpack.c.l.b16 %v1185
    %v1255 = vunpack.c.h.b16 %v1185
    %v1256 = vunpack.c.l.b16 %v1186
    %v1257 = vunpack.c.l.b16 %v1187
    %v1258 = vunpack.c.h.b16 %v1187
    %v1259 = vunpack.c.l.b16 %v1188
    %v1260 = vunpack.c.l.b16 %v1189
    %v1261 = vunpack.c.h.b16 %v1189
    %v1262 = vunpack.c.l.b16 %v1190
    %v1263 = vunpack.c.l.b16 %v1191
    %v1264 = vunpack.c.h.b16 %v1191
    %v1265 = vunpack.c.l.b16 %v1192
    %v1266 = vunpack.c.l.b16 %v1193
    %v1267 = vunpack.c.h.b16 %v1193
    %v1268 = vunpack.c.l.b16 %v1194
    %v1269 = vunpack.c.l.b16 %v1195
    %v1270 = vunpack.c.h.b16 %v1195
    %v1271 = vunpack.c.l.b16 %v1196
    %v1272 = vunpack.c.l.b16 %v1197
    %v1273 = vunpack.c.h.b16 %v1197
    %v1274 = vunpack.c.l.b16 %v1198
    %v1275 = vunpack.c.l.b16 %v1199
    %v1276 = vunpack.c.h.b16 %v1199
    %v1277 = vunpack.c.l.b16 %v1200
    %v1278 = vunpack.c.l.b16 %v1201
    %v1279 = vunpack.c.h.b16 %v1201
    %v1280 = vunpack.c.l.b16 %v1202
    %v1281 = vunpack.c.l.b16 %v1203
    %v1282 = vunpack.c.h.b16 %v1203
    %v1283 = vunpack.c.l.b16 %v1204
    %v1284 = vunpack.c.l.b16 %v1205
    %v1285 = vunpack.c.h.b16 %v1205
    %v1286 = vunpack.c.l.b16 %v1206
    %v1287 = vpack.c.b16 %v1242, %v1239
    %v1288 = vpack.c.b16 %v1243, %v1240
    %v1289 = vpack.c.b16 %v1244, %v1241
    %v1290 = vpack.c.b16 %v1248, %v1245
    %v1291 = vpack.c.b16 %v1249, %v1246
    %v1292 = vpack.c.b16 %v1250, %v1247
    %v1293 = vpack.c.b16 %v1254, %v1251
    %v1294 = vpack.c.b16 %v1255, %v1252
    %v1295 = vpack.c.b16 %v1256, %v1253
    %v1296 = vpack.c.b16 %v1260, %v1257
    %v1297 = vpack.c.b16 %v1261, %v1258
    %v1298 = vpack.c.b16 %v1262, %v1259
    %v1299 = vpack.c.b16 %v1266, %v1263
    %v1300 = vpack.c.b16 %v1267, %v1264
    %v1301 = vpack.c.b16 %v1268, %v1265
    %v1302 = vpack.c.b16 %v1272, %v1269
    %v1303 = vpack.c.b16 %v1273, %v1270
    %v1304 = vpack.c.b16 %v1274, %v1271
    %v1305 = vpack.c.b16 %v1278, %v1275
    %v1306 = vpack.c.b16 %v1279, %v1276
    %v1307 = vpack.c.b16 %v1280, %v1277
    %v1308 = vpack.c.b16 %v1284, %v1281
    %v1309 = vpack.c.b16 %v1285, %v1282
    %v1310 = vpack.c.b16 %v1286, %v1283
    %1335 = vmatpush.bf16.msra.mxu0 %v1308
    %1336 = vmatpush.bf16.msra.mxu0 %v1305
    %1337 = vmatpush.bf16.msra.mxu0 %v1302
    %1338 = vmatpush.bf16.msra.mxu0 %v1299
    %1339 = vmatpush.bf16.msra.mxu0 %v1296
    %1340 = vmatpush.bf16.msra.mxu0 %v1293
    %1341 = vmatpush.bf16.msra.mxu0 %v1290
    %1342 = vmatpush.bf16.msra.mxu0 %v1287
    %1343 = vmatmul.bf16.gmra.mxu0 %v1174
    %v1344 = vpop.f32.mrf.mxu0
    %v1345 = vadd.f32 %v437, %v1344
    %v1346 = vpop.f32.mrf.mxu0
    %1347 = vdwg.mxu0
    %1348 = vmatpush.bf16.msra.mxu0 %v1309
    %1349 = vmatpush.bf16.msra.mxu0 %v1306
    %1350 = vmatpush.bf16.msra.mxu0 %v1303
    %1351 = vmatpush.bf16.msra.mxu0 %v1300
    %1352 = vmatpush.bf16.msra.mxu0 %v1297
    %1353 = vmatpush.bf16.msra.mxu0 %v1294
    %1354 = vmatpush.bf16.msra.mxu0 %v1291
    %1355 = vmatpush.bf16.msra.mxu0 %v1288
    %1356 = vmatmul.bf16.gmra.mxu0 %v1174
    %v1357 = vpop.f32.mrf.mxu0
    %v1358 = vadd.f32 %v438, %v1357
    %v1359 = vpop.f32.mrf.mxu0
    %1360 = vdwg.mxu0
    %1361 = vmatpush.bf16.msra.mxu0 %v1310
    %1362 = vmatpush.bf16.msra.mxu0 %v1307
    %1363 = vmatpush.bf16.msra.mxu0 %v1304
    %1364 = vmatpush.bf16.msra.mxu0 %v1301
    %1365 = vmatpush.bf16.msra.mxu0 %v1298
    %1366 = vmatpush.bf16.msra.mxu0 %v1295
    %1367 = vmatpush.bf16.msra.mxu0 %v1292
    %1368 = vmatpush.bf16.msra.mxu0 %v1289
    %1369 = vmatmul.bf16.gmra.mxu0 %v1174
    %v1370 = vpop.f32.mrf.mxu0
    %v1371 = vadd.f32 %v439, %v1370
    %v1372 = vpop.f32.mrf.mxu0
    %1373 = vdwg.mxu0
    %v1374 = vadd.f32 %v1171, %v1345
    %v1375 = vxor.u32 %v1374, 2147483648
    %v1376 = vmul.f32 %v1375, 1.442695
    %v1377 = vpow.pop %v1376
    %v1378 = vadd.f32 %v1377, 1.0
    %v1379 = vrcp.pop %v1378
    %v1380 = vmul.f32 %v1378, %v1379
    %v1381 = vsub.f32 1.0, %v1380
    %v1382 = vmul.f32 %v1379, %v1381
    %v1383 = vadd.f32 %v1379, %v1382
    %vm1384 = vweird.f32 %v1378
    %vm1385 = vweird.f32 %v1379
    %vm1386 = vmor %vm1384, %vm1385
    %v1387 = vsel %vm1386, %v1379, %v1383
    %v1388 = vand.u32 2147483647, %v1378
    %vm1389 = vcmp.eq.f32.partialorder %v1388, 8.507059e+37
    %v1390 = vand.u32 %v1378, 2147483648
    %v1391 = vor.u32 1.1754944e-38, %v1390
    %v1392 = vsel %vm1389, %v1391, %v1387
    %v1393 = vmul.f32 1.0, %v1392
    %v1394 = vadd.f32 %v1172, %v1358
    %v1395 = vxor.u32 %v1394, 2147483648
    %v1396 = vmul.f32 %v1395, 1.442695
    %v1397 = vpow.pop %v1396
    %v1398 = vadd.f32 %v1397, 1.0
    %v1399 = vrcp.pop %v1398
    %v1400 = vmul.f32 %v1398, %v1399
    %v1401 = vsub.f32 1.0, %v1400
    %v1402 = vmul.f32 %v1399, %v1401
    %v1403 = vadd.f32 %v1399, %v1402
    %vm1404 = vweird.f32 %v1398
    %vm1405 = vweird.f32 %v1399
    %vm1406 = vmor %vm1404, %vm1405
    %v1407 = vsel %vm1406, %v1399, %v1403
    %v1408 = vand.u32 2147483647, %v1398
    %vm1409 = vcmp.eq.f32.partialorder %v1408, 8.507059e+37
    %v1410 = vand.u32 %v1398, 2147483648
    %v1411 = vor.u32 1.1754944e-38, %v1410
    %v1412 = vsel %vm1409, %v1411, %v1407
    %v1413 = vmul.f32 1.0, %v1412
    %v1414 = vmul.f32 %v1393, %v1371
    %v1415 = vadd.f32 %v1173, %v1414
    %v1416 = vtanh.pop %v1415
    %v1417 = vsub.f32 1.0, %v1413
    %v1418 = vmul.f32 %v1417, %v1416
    %v1419 = vmul.f32 %v1413, %v1165
    %v1420 = vadd.f32 %v1418, %v1419
    %s1421 = scalar_lea.vmem [#allocation11], 24
    %1422 = vst [vmem:[%s1421] sm:$0xff] %v1420
    %s1423 = smul.u32 4, 3
    %s1424 = smul.addr %s1423, 8
    %s1425 = scalar_lea.vmem [#allocation2], %s1424
    %v1426 = vld [vmem:[%s1425] sm:$0xff]
    %v1427 = vld [vmem:[%s1425 + $0x8] sm:$0xff]
    %v1428 = vld [vmem:[%s1425 + $0x10] sm:$0xff]
    %v1429 = vpack.c.bf16 %v1420, %v1420
    %v1430 = vld [vmem:[#allocation8] sm:$0xff]
    %v1431 = vld [vmem:[#allocation8 + $0x8] sm:$0xf]
    %v1432 = vld [vmem:[#allocation8 + $0xc] sm:$0xff]
    %v1433 = vld [vmem:[#allocation8 + $0x14] sm:$0xf]
    %v1434 = vld [vmem:[#allocation8 + $0x18] sm:$0xff]
    %v1435 = vld [vmem:[#allocation8 + $0x20] sm:$0xf]
    %v1436 = vld [vmem:[#allocation8 + $0x24] sm:$0xff]
    %v1437 = vld [vmem:[#allocation8 + $0x2c] sm:$0xf]
    %v1438 = vld [vmem:[#allocation8 + $0x30] sm:$0xff]
    %v1439 = vld [vmem:[#allocation8 + $0x38] sm:$0xf]
    %v1440 = vld [vmem:[#allocation8 + $0x3c] sm:$0xff]
    %v1441 = vld [vmem:[#allocation8 + $0x44] sm:$0xf]
    %v1442 = vld [vmem:[#allocation8 + $0x48] sm:$0xff]
    %v1443 = vld [vmem:[#allocation8 + $0x50] sm:$0xf]
    %v1444 = vld [vmem:[#allocation8 + $0x54] sm:$0xff]
    %v1445 = vld [vmem:[#allocation8 + $0x5c] sm:$0xf]
    %v1446 = vld [vmem:[#allocation8 + $0x60] sm:$0xff]
    %v1447 = vld [vmem:[#allocation8 + $0x68] sm:$0xf]
    %v1448 = vld [vmem:[#allocation8 + $0x6c] sm:$0xff]
    %v1449 = vld [vmem:[#allocation8 + $0x74] sm:$0xf]
    %v1450 = vld [vmem:[#allocation8 + $0x78] sm:$0xff]
    %v1451 = vld [vmem:[#allocation8 + $0x80] sm:$0xf]
    %v1452 = vld [vmem:[#allocation8 + $0x84] sm:$0xff]
    %v1453 = vld [vmem:[#allocation8 + $0x8c] sm:$0xf]
    %v1454 = vld [vmem:[#allocation8 + $0x90] sm:$0xff]
    %v1455 = vld [vmem:[#allocation8 + $0x98] sm:$0xf]
    %v1456 = vld [vmem:[#allocation8 + $0x9c] sm:$0xff]
    %v1457 = vld [vmem:[#allocation8 + $0xa4] sm:$0xf]
    %v1458 = vld [vmem:[#allocation8 + $0xa8] sm:$0xff]
    %v1459 = vld [vmem:[#allocation8 + $0xb0] sm:$0xf]
    %v1460 = vld [vmem:[#allocation8 + $0xb4] sm:$0xff]
    %v1461 = vld [vmem:[#allocation8 + $0xbc] sm:$0xf]
    %v1494 = vunpack.c.l.b16 %v1430
    %v1495 = vunpack.c.h.b16 %v1430
    %v1496 = vunpack.c.l.b16 %v1431
    %v1497 = vunpack.c.l.b16 %v1432
    %v1498 = vunpack.c.h.b16 %v1432
    %v1499 = vunpack.c.l.b16 %v1433
    %v1500 = vunpack.c.l.b16 %v1434
    %v1501 = vunpack.c.h.b16 %v1434
    %v1502 = vunpack.c.l.b16 %v1435
    %v1503 = vunpack.c.l.b16 %v1436
    %v1504 = vunpack.c.h.b16 %v1436
    %v1505 = vunpack.c.l.b16 %v1437
    %v1506 = vunpack.c.l.b16 %v1438
    %v1507 = vunpack.c.h.b16 %v1438
    %v1508 = vunpack.c.l.b16 %v1439
    %v1509 = vunpack.c.l.b16 %v1440
    %v1510 = vunpack.c.h.b16 %v1440
    %v1511 = vunpack.c.l.b16 %v1441
    %v1512 = vunpack.c.l.b16 %v1442
    %v1513 = vunpack.c.h.b16 %v1442
    %v1514 = vunpack.c.l.b16 %v1443
    %v1515 = vunpack.c.l.b16 %v1444
    %v1516 = vunpack.c.h.b16 %v1444
    %v1517 = vunpack.c.l.b16 %v1445
    %v1518 = vunpack.c.l.b16 %v1446
    %v1519 = vunpack.c.h.b16 %v1446
    %v1520 = vunpack.c.l.b16 %v1447
    %v1521 = vunpack.c.l.b16 %v1448
    %v1522 = vunpack.c.h.b16 %v1448
    %v1523 = vunpack.c.l.b16 %v1449
    %v1524 = vunpack.c.l.b16 %v1450
    %v1525 = vunpack.c.h.b16 %v1450
    %v1526 = vunpack.c.l.b16 %v1451
    %v1527 = vunpack.c.l.b16 %v1452
    %v1528 = vunpack.c.h.b16 %v1452
    %v1529 = vunpack.c.l.b16 %v1453
    %v1530 = vunpack.c.l.b16 %v1454
    %v1531 = vunpack.c.h.b16 %v1454
    %v1532 = vunpack.c.l.b16 %v1455
    %v1533 = vunpack.c.l.b16 %v1456
    %v1534 = vunpack.c.h.b16 %v1456
    %v1535 = vunpack.c.l.b16 %v1457
    %v1536 = vunpack.c.l.b16 %v1458
    %v1537 = vunpack.c.h.b16 %v1458
    %v1538 = vunpack.c.l.b16 %v1459
    %v1539 = vunpack.c.l.b16 %v1460
    %v1540 = vunpack.c.h.b16 %v1460
    %v1541 = vunpack.c.l.b16 %v1461
    %v1542 = vpack.c.b16 %v1497, %v1494
    %v1543 = vpack.c.b16 %v1498, %v1495
    %v1544 = vpack.c.b16 %v1499, %v1496
    %v1545 = vpack.c.b16 %v1503, %v1500
    %v1546 = vpack.c.b16 %v1504, %v1501
    %v1547 = vpack.c.b16 %v1505, %v1502
    %v1548 = vpack.c.b16 %v1509, %v1506
    %v1549 = vpack.c.b16 %v1510, %v1507
    %v1550 = vpack.c.b16 %v1511, %v1508
    %v1551 = vpack.c.b16 %v1515, %v1512
    %v1552 = vpack.c.b16 %v1516, %v1513
    %v1553 = vpack.c.b16 %v1517, %v1514
    %v1554 = vpack.c.b16 %v1521, %v1518
    %v1555 = vpack.c.b16 %v1522, %v1519
    %v1556 = vpack.c.b16 %v1523, %v1520
    %v1557 = vpack.c.b16 %v1527, %v1524
    %v1558 = vpack.c.b16 %v1528, %v1525
    %v1559 = vpack.c.b16 %v1529, %v1526
    %v1560 = vpack.c.b16 %v1533, %v1530
    %v1561 = vpack.c.b16 %v1534, %v1531
    %v1562 = vpack.c.b16 %v1535, %v1532
    %v1563 = vpack.c.b16 %v1539, %v1536
    %v1564 = vpack.c.b16 %v1540, %v1537
    %v1565 = vpack.c.b16 %v1541, %v1538
    %1590 = vmatpush.bf16.msra.mxu0 %v1563
    %1591 = vmatpush.bf16.msra.mxu0 %v1560
    %1592 = vmatpush.bf16.msra.mxu0 %v1557
    %1593 = vmatpush.bf16.msra.mxu0 %v1554
    %1594 = vmatpush.bf16.msra.mxu0 %v1551
    %1595 = vmatpush.bf16.msra.mxu0 %v1548
    %1596 = vmatpush.bf16.msra.mxu0 %v1545
    %1597 = vmatpush.bf16.msra.mxu0 %v1542
    %1598 = vmatmul.bf16.gmra.mxu0 %v1429
    %v1599 = vpop.f32.mrf.mxu0
    %v1600 = vadd.f32 %v437, %v1599
    %v1601 = vpop.f32.mrf.mxu0
    %1602 = vdwg.mxu0
    %1603 = vmatpush.bf16.msra.mxu0 %v1564
    %1604 = vmatpush.bf16.msra.mxu0 %v1561
    %1605 = vmatpush.bf16.msra.mxu0 %v1558
    %1606 = vmatpush.bf16.msra.mxu0 %v1555
    %1607 = vmatpush.bf16.msra.mxu0 %v1552
    %1608 = vmatpush.bf16.msra.mxu0 %v1549
    %1609 = vmatpush.bf16.msra.mxu0 %v1546
    %1610 = vmatpush.bf16.msra.mxu0 %v1543
    %1611 = vmatmul.bf16.gmra.mxu0 %v1429
    %v1612 = vpop.f32.mrf.mxu0
    %v1613 = vadd.f32 %v438, %v1612
    %v1614 = vpop.f32.mrf.mxu0
    %1615 = vdwg.mxu0
    %1616 = vmatpush.bf16.msra.mxu0 %v1565
    %1617 = vmatpush.bf16.msra.mxu0 %v1562
    %1618 = vmatpush.bf16.msra.mxu0 %v1559
    %1619 = vmatpush.bf16.msra.mxu0 %v1556
    %1620 = vmatpush.bf16.msra.mxu0 %v1553
    %1621 = vmatpush.bf16.msra.mxu0 %v1550
    %1622 = vmatpush.bf16.msra.mxu0 %v1547
    %1623 = vmatpush.bf16.msra.mxu0 %v1544
    %1624 = vmatmul.bf16.gmra.mxu0 %v1429
    %v1625 = vpop.f32.mrf.mxu0
    %v1626 = vadd.f32 %v439, %v1625
    %v1627 = vpop.f32.mrf.mxu0
    %1628 = vdwg.mxu0
    %v1629 = vadd.f32 %v1426, %v1600
    %v1630 = vxor.u32 %v1629, 2147483648
    %v1631 = vmul.f32 %v1630, 1.442695
    %v1632 = vpow.pop %v1631
    %v1633 = vadd.f32 %v1632, 1.0
    %v1634 = vrcp.pop %v1633
    %v1635 = vmul.f32 %v1633, %v1634
    %v1636 = vsub.f32 1.0, %v1635
    %v1637 = vmul.f32 %v1634, %v1636
    %v1638 = vadd.f32 %v1634, %v1637
    %vm1639 = vweird.f32 %v1633
    %vm1640 = vweird.f32 %v1634
    %vm1641 = vmor %vm1639, %vm1640
    %v1642 = vsel %vm1641, %v1634, %v1638
    %v1643 = vand.u32 2147483647, %v1633
    %vm1644 = vcmp.eq.f32.partialorder %v1643, 8.507059e+37
    %v1645 = vand.u32 %v1633, 2147483648
    %v1646 = vor.u32 1.1754944e-38, %v1645
    %v1647 = vsel %vm1644, %v1646, %v1642
    %v1648 = vmul.f32 1.0, %v1647
    %v1649 = vadd.f32 %v1427, %v1613
    %v1650 = vxor.u32 %v1649, 2147483648
    %v1651 = vmul.f32 %v1650, 1.442695
    %v1652 = vpow.pop %v1651
    %v1653 = vadd.f32 %v1652, 1.0
    %v1654 = vrcp.pop %v1653
    %v1655 = vmul.f32 %v1653, %v1654
    %v1656 = vsub.f32 1.0, %v1655
    %v1657 = vmul.f32 %v1654, %v1656
    %v1658 = vadd.f32 %v1654, %v1657
    %vm1659 = vweird.f32 %v1653
    %vm1660 = vweird.f32 %v1654
    %vm1661 = vmor %vm1659, %vm1660
    %v1662 = vsel %vm1661, %v1654, %v1658
    %v1663 = vand.u32 2147483647, %v1653
    %vm1664 = vcmp.eq.f32.partialorder %v1663, 8.507059e+37
    %v1665 = vand.u32 %v1653, 2147483648
    %v1666 = vor.u32 1.1754944e-38, %v1665
    %v1667 = vsel %vm1664, %v1666, %v1662
    %v1668 = vmul.f32 1.0, %v1667
    %v1669 = vmul.f32 %v1648, %v1626
    %v1670 = vadd.f32 %v1428, %v1669
    %v1671 = vtanh.pop %v1670
    %v1672 = vsub.f32 1.0, %v1668
    %v1673 = vmul.f32 %v1672, %v1671
    %v1674 = vmul.f32 %v1668, %v1420
    %v1675 = vadd.f32 %v1673, %v1674
    %s1676 = scalar_lea.vmem [#allocation11], 32
    %1677 = vst [vmem:[%s1676] sm:$0xff] %v1675
    %s1678 = smul.u32 5, 3
    %s1679 = smul.addr %s1678, 8
    %s1680 = scalar_lea.vmem [#allocation2], %s1679
    %v1681 = vld [vmem:[%s1680] sm:$0xff]
    %v1682 = vld [vmem:[%s1680 + $0x8] sm:$0xff]
    %v1683 = vld [vmem:[%s1680 + $0x10] sm:$0xff]
    %v1684 = vpack.c.bf16 %v1675, %v1675
    %v1685 = vld [vmem:[#allocation8] sm:$0xff]
    %v1686 = vld [vmem:[#allocation8 + $0x8] sm:$0xf]
    %v1687 = vld [vmem:[#allocation8 + $0xc] sm:$0xff]
    %v1688 = vld [vmem:[#allocation8 + $0x14] sm:$0xf]
    %v1689 = vld [vmem:[#allocation8 + $0x18] sm:$0xff]
    %v1690 = vld [vmem:[#allocation8 + $0x20] sm:$0xf]
    %v1691 = vld [vmem:[#allocation8 + $0x24] sm:$0xff]
    %v1692 = vld [vmem:[#allocation8 + $0x2c] sm:$0xf]
    %v1693 = vld [vmem:[#allocation8 + $0x30] sm:$0xff]
    %v1694 = vld [vmem:[#allocation8 + $0x38] sm:$0xf]
    %v1695 = vld [vmem:[#allocation8 + $0x3c] sm:$0xff]
    %v1696 = vld [vmem:[#allocation8 + $0x44] sm:$0xf]
    %v1697 = vld [vmem:[#allocation8 + $0x48] sm:$0xff]
    %v1698 = vld [vmem:[#allocation8 + $0x50] sm:$0xf]
    %v1699 = vld [vmem:[#allocation8 + $0x54] sm:$0xff]
    %v1700 = vld [vmem:[#allocation8 + $0x5c] sm:$0xf]
    %v1701 = vld [vmem:[#allocation8 + $0x60] sm:$0xff]
    %v1702 = vld [vmem:[#allocation8 + $0x68] sm:$0xf]
    %v1703 = vld [vmem:[#allocation8 + $0x6c] sm:$0xff]
    %v1704 = vld [vmem:[#allocation8 + $0x74] sm:$0xf]
    %v1705 = vld [vmem:[#allocation8 + $0x78] sm:$0xff]
    %v1706 = vld [vmem:[#allocation8 + $0x80] sm:$0xf]
    %v1707 = vld [vmem:[#allocation8 + $0x84] sm:$0xff]
    %v1708 = vld [vmem:[#allocation8 + $0x8c] sm:$0xf]
    %v1709 = vld [vmem:[#allocation8 + $0x90] sm:$0xff]
    %v1710 = vld [vmem:[#allocation8 + $0x98] sm:$0xf]
    %v1711 = vld [vmem:[#allocation8 + $0x9c] sm:$0xff]
    %v1712 = vld [vmem:[#allocation8 + $0xa4] sm:$0xf]
    %v1713 = vld [vmem:[#allocation8 + $0xa8] sm:$0xff]
    %v1714 = vld [vmem:[#allocation8 + $0xb0] sm:$0xf]
    %v1715 = vld [vmem:[#allocation8 + $0xb4] sm:$0xff]
    %v1716 = vld [vmem:[#allocation8 + $0xbc] sm:$0xf]
    %v1749 = vunpack.c.l.b16 %v1685
    %v1750 = vunpack.c.h.b16 %v1685
    %v1751 = vunpack.c.l.b16 %v1686
    %v1752 = vunpack.c.l.b16 %v1687
    %v1753 = vunpack.c.h.b16 %v1687
    %v1754 = vunpack.c.l.b16 %v1688
    %v1755 = vunpack.c.l.b16 %v1689
    %v1756 = vunpack.c.h.b16 %v1689
    %v1757 = vunpack.c.l.b16 %v1690
    %v1758 = vunpack.c.l.b16 %v1691
    %v1759 = vunpack.c.h.b16 %v1691
    %v1760 = vunpack.c.l.b16 %v1692
    %v1761 = vunpack.c.l.b16 %v1693
    %v1762 = vunpack.c.h.b16 %v1693
    %v1763 = vunpack.c.l.b16 %v1694
    %v1764 = vunpack.c.l.b16 %v1695
    %v1765 = vunpack.c.h.b16 %v1695
    %v1766 = vunpack.c.l.b16 %v1696
    %v1767 = vunpack.c.l.b16 %v1697
    %v1768 = vunpack.c.h.b16 %v1697
    %v1769 = vunpack.c.l.b16 %v1698
    %v1770 = vunpack.c.l.b16 %v1699
    %v1771 = vunpack.c.h.b16 %v1699
    %v1772 = vunpack.c.l.b16 %v1700
    %v1773 = vunpack.c.l.b16 %v1701
    %v1774 = vunpack.c.h.b16 %v1701
    %v1775 = vunpack.c.l.b16 %v1702
    %v1776 = vunpack.c.l.b16 %v1703
    %v1777 = vunpack.c.h.b16 %v1703
    %v1778 = vunpack.c.l.b16 %v1704
    %v1779 = vunpack.c.l.b16 %v1705
    %v1780 = vunpack.c.h.b16 %v1705
    %v1781 = vunpack.c.l.b16 %v1706
    %v1782 = vunpack.c.l.b16 %v1707
    %v1783 = vunpack.c.h.b16 %v1707
    %v1784 = vunpack.c.l.b16 %v1708
    %v1785 = vunpack.c.l.b16 %v1709
    %v1786 = vunpack.c.h.b16 %v1709
    %v1787 = vunpack.c.l.b16 %v1710
    %v1788 = vunpack.c.l.b16 %v1711
    %v1789 = vunpack.c.h.b16 %v1711
    %v1790 = vunpack.c.l.b16 %v1712
    %v1791 = vunpack.c.l.b16 %v1713
    %v1792 = vunpack.c.h.b16 %v1713
    %v1793 = vunpack.c.l.b16 %v1714
    %v1794 = vunpack.c.l.b16 %v1715
    %v1795 = vunpack.c.h.b16 %v1715
    %v1796 = vunpack.c.l.b16 %v1716
    %v1797 = vpack.c.b16 %v1752, %v1749
    %v1798 = vpack.c.b16 %v1753, %v1750
    %v1799 = vpack.c.b16 %v1754, %v1751
    %v1800 = vpack.c.b16 %v1758, %v1755
    %v1801 = vpack.c.b16 %v1759, %v1756
    %v1802 = vpack.c.b16 %v1760, %v1757
    %v1803 = vpack.c.b16 %v1764, %v1761
    %v1804 = vpack.c.b16 %v1765, %v1762
    %v1805 = vpack.c.b16 %v1766, %v1763
    %v1806 = vpack.c.b16 %v1770, %v1767
    %v1807 = vpack.c.b16 %v1771, %v1768
    %v1808 = vpack.c.b16 %v1772, %v1769
    %v1809 = vpack.c.b16 %v1776, %v1773
    %v1810 = vpack.c.b16 %v1777, %v1774
    %v1811 = vpack.c.b16 %v1778, %v1775
    %v1812 = vpack.c.b16 %v1782, %v1779
    %v1813 = vpack.c.b16 %v1783, %v1780
    %v1814 = vpack.c.b16 %v1784, %v1781
    %v1815 = vpack.c.b16 %v1788, %v1785
    %v1816 = vpack.c.b16 %v1789, %v1786
    %v1817 = vpack.c.b16 %v1790, %v1787
    %v1818 = vpack.c.b16 %v1794, %v1791
    %v1819 = vpack.c.b16 %v1795, %v1792
    %v1820 = vpack.c.b16 %v1796, %v1793
    %1845 = vmatpush.bf16.msra.mxu0 %v1818
    %1846 = vmatpush.bf16.msra.mxu0 %v1815
    %1847 = vmatpush.bf16.msra.mxu0 %v1812
    %1848 = vmatpush.bf16.msra.mxu0 %v1809
    %1849 = vmatpush.bf16.msra.mxu0 %v1806
    %1850 = vmatpush.bf16.msra.mxu0 %v1803
    %1851 = vmatpush.bf16.msra.mxu0 %v1800
    %1852 = vmatpush.bf16.msra.mxu0 %v1797
    %1853 = vmatmul.bf16.gmra.mxu0 %v1684
    %v1854 = vpop.f32.mrf.mxu0
    %v1855 = vadd.f32 %v437, %v1854
    %v1856 = vpop.f32.mrf.mxu0
    %1857 = vdwg.mxu0
    %1858 = vmatpush.bf16.msra.mxu0 %v1819
    %1859 = vmatpush.bf16.msra.mxu0 %v1816
    %1860 = vmatpush.bf16.msra.mxu0 %v1813
    %1861 = vmatpush.bf16.msra.mxu0 %v1810
    %1862 = vmatpush.bf16.msra.mxu0 %v1807
    %1863 = vmatpush.bf16.msra.mxu0 %v1804
    %1864 = vmatpush.bf16.msra.mxu0 %v1801
    %1865 = vmatpush.bf16.msra.mxu0 %v1798
    %1866 = vmatmul.bf16.gmra.mxu0 %v1684
    %v1867 = vpop.f32.mrf.mxu0
    %v1868 = vadd.f32 %v438, %v1867
    %v1869 = vpop.f32.mrf.mxu0
    %1870 = vdwg.mxu0
    %1871 = vmatpush.bf16.msra.mxu0 %v1820
    %1872 = vmatpush.bf16.msra.mxu0 %v1817
    %1873 = vmatpush.bf16.msra.mxu0 %v1814
    %1874 = vmatpush.bf16.msra.mxu0 %v1811
    %1875 = vmatpush.bf16.msra.mxu0 %v1808
    %1876 = vmatpush.bf16.msra.mxu0 %v1805
    %1877 = vmatpush.bf16.msra.mxu0 %v1802
    %1878 = vmatpush.bf16.msra.mxu0 %v1799
    %1879 = vmatmul.bf16.gmra.mxu0 %v1684
    %v1880 = vpop.f32.mrf.mxu0
    %v1881 = vadd.f32 %v439, %v1880
    %v1882 = vpop.f32.mrf.mxu0
    %1883 = vdwg.mxu0
    %v1884 = vadd.f32 %v1681, %v1855
    %v1885 = vxor.u32 %v1884, 2147483648
    %v1886 = vmul.f32 %v1885, 1.442695
    %v1887 = vpow.pop %v1886
    %v1888 = vadd.f32 %v1887, 1.0
    %v1889 = vrcp.pop %v1888
    %v1890 = vmul.f32 %v1888, %v1889
    %v1891 = vsub.f32 1.0, %v1890
    %v1892 = vmul.f32 %v1889, %v1891
    %v1893 = vadd.f32 %v1889, %v1892
    %vm1894 = vweird.f32 %v1888
    %vm1895 = vweird.f32 %v1889
    %vm1896 = vmor %vm1894, %vm1895
    %v1897 = vsel %vm1896, %v1889, %v1893
    %v1898 = vand.u32 2147483647, %v1888
    %vm1899 = vcmp.eq.f32.partialorder %v1898, 8.507059e+37
    %v1900 = vand.u32 %v1888, 2147483648
    %v1901 = vor.u32 1.1754944e-38, %v1900
    %v1902 = vsel %vm1899, %v1901, %v1897
    %v1903 = vmul.f32 1.0, %v1902
    %v1904 = vadd.f32 %v1682, %v1868
    %v1905 = vxor.u32 %v1904, 2147483648
    %v1906 = vmul.f32 %v1905, 1.442695
    %v1907 = vpow.pop %v1906
    %v1908 = vadd.f32 %v1907, 1.0
    %v1909 = vrcp.pop %v1908
    %v1910 = vmul.f32 %v1908, %v1909
    %v1911 = vsub.f32 1.0, %v1910
    %v1912 = vmul.f32 %v1909, %v1911
    %v1913 = vadd.f32 %v1909, %v1912
    %vm1914 = vweird.f32 %v1908
    %vm1915 = vweird.f32 %v1909
    %vm1916 = vmor %vm1914, %vm1915
    %v1917 = vsel %vm1916, %v1909, %v1913
    %v1918 = vand.u32 2147483647, %v1908
    %vm1919 = vcmp.eq.f32.partialorder %v1918, 8.507059e+37
    %v1920 = vand.u32 %v1908, 2147483648
    %v1921 = vor.u32 1.1754944e-38, %v1920
    %v1922 = vsel %vm1919, %v1921, %v1917
    %v1923 = vmul.f32 1.0, %v1922
    %v1924 = vmul.f32 %v1903, %v1881
    %v1925 = vadd.f32 %v1683, %v1924
    %v1926 = vtanh.pop %v1925
    %v1927 = vsub.f32 1.0, %v1923
    %v1928 = vmul.f32 %v1927, %v1926
    %v1929 = vmul.f32 %v1923, %v1675
    %v1930 = vadd.f32 %v1928, %v1929
    %s1931 = scalar_lea.vmem [#allocation11], 40
    %1932 = vst [vmem:[%s1931] sm:$0xff] %v1930
    %s1933 = smul.u32 6, 3
    %s1934 = smul.addr %s1933, 8
    %s1935 = scalar_lea.vmem [#allocation2], %s1934
    %v1936 = vld [vmem:[%s1935] sm:$0xff]
    %v1937 = vld [vmem:[%s1935 + $0x8] sm:$0xff]
    %v1938 = vld [vmem:[%s1935 + $0x10] sm:$0xff]
    %v1939 = vpack.c.bf16 %v1930, %v1930
    %v1940 = vld [vmem:[#allocation8] sm:$0xff]
    %v1941 = vld [vmem:[#allocation8 + $0x8] sm:$0xf]
    %v1942 = vld [vmem:[#allocation8 + $0xc] sm:$0xff]
    %v1943 = vld [vmem:[#allocation8 + $0x14] sm:$0xf]
    %v1944 = vld [vmem:[#allocation8 + $0x18] sm:$0xff]
    %v1945 = vld [vmem:[#allocation8 + $0x20] sm:$0xf]
    %v1946 = vld [vmem:[#allocation8 + $0x24] sm:$0xff]
    %v1947 = vld [vmem:[#allocation8 + $0x2c] sm:$0xf]
    %v1948 = vld [vmem:[#allocation8 + $0x30] sm:$0xff]
    %v1949 = vld [vmem:[#allocation8 + $0x38] sm:$0xf]
    %v1950 = vld [vmem:[#allocation8 + $0x3c] sm:$0xff]
    %v1951 = vld [vmem:[#allocation8 + $0x44] sm:$0xf]
    %v1952 = vld [vmem:[#allocation8 + $0x48] sm:$0xff]
    %v1953 = vld [vmem:[#allocation8 + $0x50] sm:$0xf]
    %v1954 = vld [vmem:[#allocation8 + $0x54] sm:$0xff]
    %v1955 = vld [vmem:[#allocation8 + $0x5c] sm:$0xf]
    %v1956 = vld [vmem:[#allocation8 + $0x60] sm:$0xff]
    %v1957 = vld [vmem:[#allocation8 + $0x68] sm:$0xf]
    %v1958 = vld [vmem:[#allocation8 + $0x6c] sm:$0xff]
    %v1959 = vld [vmem:[#allocation8 + $0x74] sm:$0xf]
    %v1960 = vld [vmem:[#allocation8 + $0x78] sm:$0xff]
    %v1961 = vld [vmem:[#allocation8 + $0x80] sm:$0xf]
    %v1962 = vld [vmem:[#allocation8 + $0x84] sm:$0xff]
    %v1963 = vld [vmem:[#allocation8 + $0x8c] sm:$0xf]
    %v1964 = vld [vmem:[#allocation8 + $0x90] sm:$0xff]
    %v1965 = vld [vmem:[#allocation8 + $0x98] sm:$0xf]
    %v1966 = vld [vmem:[#allocation8 + $0x9c] sm:$0xff]
    %v1967 = vld [vmem:[#allocation8 + $0xa4] sm:$0xf]
    %v1968 = vld [vmem:[#allocation8 + $0xa8] sm:$0xff]
    %v1969 = vld [vmem:[#allocation8 + $0xb0] sm:$0xf]
    %v1970 = vld [vmem:[#allocation8 + $0xb4] sm:$0xff]
    %v1971 = vld [vmem:[#allocation8 + $0xbc] sm:$0xf]
    %v2004 = vunpack.c.l.b16 %v1940
    %v2005 = vunpack.c.h.b16 %v1940
    %v2006 = vunpack.c.l.b16 %v1941
    %v2007 = vunpack.c.l.b16 %v1942
    %v2008 = vunpack.c.h.b16 %v1942
    %v2009 = vunpack.c.l.b16 %v1943
    %v2010 = vunpack.c.l.b16 %v1944
    %v2011 = vunpack.c.h.b16 %v1944
    %v2012 = vunpack.c.l.b16 %v1945
    %v2013 = vunpack.c.l.b16 %v1946
    %v2014 = vunpack.c.h.b16 %v1946
    %v2015 = vunpack.c.l.b16 %v1947
    %v2016 = vunpack.c.l.b16 %v1948
    %v2017 = vunpack.c.h.b16 %v1948
    %v2018 = vunpack.c.l.b16 %v1949
    %v2019 = vunpack.c.l.b16 %v1950
    %v2020 = vunpack.c.h.b16 %v1950
    %v2021 = vunpack.c.l.b16 %v1951
    %v2022 = vunpack.c.l.b16 %v1952
    %v2023 = vunpack.c.h.b16 %v1952
    %v2024 = vunpack.c.l.b16 %v1953
    %v2025 = vunpack.c.l.b16 %v1954
    %v2026 = vunpack.c.h.b16 %v1954
    %v2027 = vunpack.c.l.b16 %v1955
    %v2028 = vunpack.c.l.b16 %v1956
    %v2029 = vunpack.c.h.b16 %v1956
    %v2030 = vunpack.c.l.b16 %v1957
    %v2031 = vunpack.c.l.b16 %v1958
    %v2032 = vunpack.c.h.b16 %v1958
    %v2033 = vunpack.c.l.b16 %v1959
    %v2034 = vunpack.c.l.b16 %v1960
    %v2035 = vunpack.c.h.b16 %v1960
    %v2036 = vunpack.c.l.b16 %v1961
    %v2037 = vunpack.c.l.b16 %v1962
    %v2038 = vunpack.c.h.b16 %v1962
    %v2039 = vunpack.c.l.b16 %v1963
    %v2040 = vunpack.c.l.b16 %v1964
    %v2041 = vunpack.c.h.b16 %v1964
    %v2042 = vunpack.c.l.b16 %v1965
    %v2043 = vunpack.c.l.b16 %v1966
    %v2044 = vunpack.c.h.b16 %v1966
    %v2045 = vunpack.c.l.b16 %v1967
    %v2046 = vunpack.c.l.b16 %v1968
    %v2047 = vunpack.c.h.b16 %v1968
    %v2048 = vunpack.c.l.b16 %v1969
    %v2049 = vunpack.c.l.b16 %v1970
    %v2050 = vunpack.c.h.b16 %v1970
    %v2051 = vunpack.c.l.b16 %v1971
    %v2052 = vpack.c.b16 %v2007, %v2004
    %v2053 = vpack.c.b16 %v2008, %v2005
    %v2054 = vpack.c.b16 %v2009, %v2006
    %v2055 = vpack.c.b16 %v2013, %v2010
    %v2056 = vpack.c.b16 %v2014, %v2011
    %v2057 = vpack.c.b16 %v2015, %v2012
    %v2058 = vpack.c.b16 %v2019, %v2016
    %v2059 = vpack.c.b16 %v2020, %v2017
    %v2060 = vpack.c.b16 %v2021, %v2018
    %v2061 = vpack.c.b16 %v2025, %v2022
    %v2062 = vpack.c.b16 %v2026, %v2023
    %v2063 = vpack.c.b16 %v2027, %v2024
    %v2064 = vpack.c.b16 %v2031, %v2028
    %v2065 = vpack.c.b16 %v2032, %v2029
    %v2066 = vpack.c.b16 %v2033, %v2030
    %v2067 = vpack.c.b16 %v2037, %v2034
    %v2068 = vpack.c.b16 %v2038, %v2035
    %v2069 = vpack.c.b16 %v2039, %v2036
    %v2070 = vpack.c.b16 %v2043, %v2040
    %v2071 = vpack.c.b16 %v2044, %v2041
    %v2072 = vpack.c.b16 %v2045, %v2042
    %v2073 = vpack.c.b16 %v2049, %v2046
    %v2074 = vpack.c.b16 %v2050, %v2047
    %v2075 = vpack.c.b16 %v2051, %v2048
    %2100 = vmatpush.bf16.msra.mxu0 %v2073
    %2101 = vmatpush.bf16.msra.mxu0 %v2070
    %2102 = vmatpush.bf16.msra.mxu0 %v2067
    %2103 = vmatpush.bf16.msra.mxu0 %v2064
    %2104 = vmatpush.bf16.msra.mxu0 %v2061
    %2105 = vmatpush.bf16.msra.mxu0 %v2058
    %2106 = vmatpush.bf16.msra.mxu0 %v2055
    %2107 = vmatpush.bf16.msra.mxu0 %v2052
    %2108 = vmatmul.bf16.gmra.mxu0 %v1939
    %v2109 = vpop.f32.mrf.mxu0
    %v2110 = vadd.f32 %v437, %v2109
    %v2111 = vpop.f32.mrf.mxu0
    %2112 = vdwg.mxu0
    %2113 = vmatpush.bf16.msra.mxu0 %v2074
    %2114 = vmatpush.bf16.msra.mxu0 %v2071
    %2115 = vmatpush.bf16.msra.mxu0 %v2068
    %2116 = vmatpush.bf16.msra.mxu0 %v2065
    %2117 = vmatpush.bf16.msra.mxu0 %v2062
    %2118 = vmatpush.bf16.msra.mxu0 %v2059
    %2119 = vmatpush.bf16.msra.mxu0 %v2056
    %2120 = vmatpush.bf16.msra.mxu0 %v2053
    %2121 = vmatmul.bf16.gmra.mxu0 %v1939
    %v2122 = vpop.f32.mrf.mxu0
    %v2123 = vadd.f32 %v438, %v2122
    %v2124 = vpop.f32.mrf.mxu0
    %2125 = vdwg.mxu0
    %2126 = vmatpush.bf16.msra.mxu0 %v2075
    %2127 = vmatpush.bf16.msra.mxu0 %v2072
    %2128 = vmatpush.bf16.msra.mxu0 %v2069
    %2129 = vmatpush.bf16.msra.mxu0 %v2066
    %2130 = vmatpush.bf16.msra.mxu0 %v2063
    %2131 = vmatpush.bf16.msra.mxu0 %v2060
    %2132 = vmatpush.bf16.msra.mxu0 %v2057
    %2133 = vmatpush.bf16.msra.mxu0 %v2054
    %2134 = vmatmul.bf16.gmra.mxu0 %v1939
    %v2135 = vpop.f32.mrf.mxu0
    %v2136 = vadd.f32 %v439, %v2135
    %v2137 = vpop.f32.mrf.mxu0
    %2138 = vdwg.mxu0
    %v2139 = vadd.f32 %v1936, %v2110
    %v2140 = vxor.u32 %v2139, 2147483648
    %v2141 = vmul.f32 %v2140, 1.442695
    %v2142 = vpow.pop %v2141
    %v2143 = vadd.f32 %v2142, 1.0
    %v2144 = vrcp.pop %v2143
    %v2145 = vmul.f32 %v2143, %v2144
    %v2146 = vsub.f32 1.0, %v2145
    %v2147 = vmul.f32 %v2144, %v2146
    %v2148 = vadd.f32 %v2144, %v2147
    %vm2149 = vweird.f32 %v2143
    %vm2150 = vweird.f32 %v2144
    %vm2151 = vmor %vm2149, %vm2150
    %v2152 = vsel %vm2151, %v2144, %v2148
    %v2153 = vand.u32 2147483647, %v2143
    %vm2154 = vcmp.eq.f32.partialorder %v2153, 8.507059e+37
    %v2155 = vand.u32 %v2143, 2147483648
    %v2156 = vor.u32 1.1754944e-38, %v2155
    %v2157 = vsel %vm2154, %v2156, %v2152
    %v2158 = vmul.f32 1.0, %v2157
    %v2159 = vadd.f32 %v1937, %v2123
    %v2160 = vxor.u32 %v2159, 2147483648
    %v2161 = vmul.f32 %v2160, 1.442695
    %v2162 = vpow.pop %v2161
    %v2163 = vadd.f32 %v2162, 1.0
    %v2164 = vrcp.pop %v2163
    %v2165 = vmul.f32 %v2163, %v2164
    %v2166 = vsub.f32 1.0, %v2165
    %v2167 = vmul.f32 %v2164, %v2166
    %v2168 = vadd.f32 %v2164, %v2167
    %vm2169 = vweird.f32 %v2163
    %vm2170 = vweird.f32 %v2164
    %vm2171 = vmor %vm2169, %vm2170
    %v2172 = vsel %vm2171, %v2164, %v2168
    %v2173 = vand.u32 2147483647, %v2163
    %vm2174 = vcmp.eq.f32.partialorder %v2173, 8.507059e+37
    %v2175 = vand.u32 %v2163, 2147483648
    %v2176 = vor.u32 1.1754944e-38, %v2175
    %v2177 = vsel %vm2174, %v2176, %v2172
    %v2178 = vmul.f32 1.0, %v2177
    %v2179 = vmul.f32 %v2158, %v2136
    %v2180 = vadd.f32 %v1938, %v2179
    %v2181 = vtanh.pop %v2180
    %v2182 = vsub.f32 1.0, %v2178
    %v2183 = vmul.f32 %v2182, %v2181
    %v2184 = vmul.f32 %v2178, %v1930
    %v2185 = vadd.f32 %v2183, %v2184
    %s2186 = scalar_lea.vmem [#allocation11], 48
    %2187 = vst [vmem:[%s2186] sm:$0xff] %v2185
    %s2188 = smul.u32 7, 3
    %s2189 = smul.addr %s2188, 8
    %s2190 = scalar_lea.vmem [#allocation2], %s2189
    %v2191 = vld [vmem:[%s2190] sm:$0xff]
    %v2192 = vld [vmem:[%s2190 + $0x8] sm:$0xff]
    %v2193 = vld [vmem:[%s2190 + $0x10] sm:$0xff]
    %v2194 = vpack.c.bf16 %v2185, %v2185
    %v2195 = vld [vmem:[#allocation8] sm:$0xff]
    %v2196 = vld [vmem:[#allocation8 + $0x8] sm:$0xf]
    %v2197 = vld [vmem:[#allocation8 + $0xc] sm:$0xff]
    %v2198 = vld [vmem:[#allocation8 + $0x14] sm:$0xf]
    %v2199 = vld [vmem:[#allocation8 + $0x18] sm:$0xff]
    %v2200 = vld [vmem:[#allocation8 + $0x20] sm:$0xf]
    %v2201 = vld [vmem:[#allocation8 + $0x24] sm:$0xff]
    %v2202 = vld [vmem:[#allocation8 + $0x2c] sm:$0xf]
    %v2203 = vld [vmem:[#allocation8 + $0x30] sm:$0xff]
    %v2204 = vld [vmem:[#allocation8 + $0x38] sm:$0xf]
    %v2205 = vld [vmem:[#allocation8 + $0x3c] sm:$0xff]
    %v2206 = vld [vmem:[#allocation8 + $0x44] sm:$0xf]
    %v2207 = vld [vmem:[#allocation8 + $0x48] sm:$0xff]
    %v2208 = vld [vmem:[#allocation8 + $0x50] sm:$0xf]
    %v2209 = vld [vmem:[#allocation8 + $0x54] sm:$0xff]
    %v2210 = vld [vmem:[#allocation8 + $0x5c] sm:$0xf]
    %v2211 = vld [vmem:[#allocation8 + $0x60] sm:$0xff]
    %v2212 = vld [vmem:[#allocation8 + $0x68] sm:$0xf]
    %v2213 = vld [vmem:[#allocation8 + $0x6c] sm:$0xff]
    %v2214 = vld [vmem:[#allocation8 + $0x74] sm:$0xf]
    %v2215 = vld [vmem:[#allocation8 + $0x78] sm:$0xff]
    %v2216 = vld [vmem:[#allocation8 + $0x80] sm:$0xf]
    %v2217 = vld [vmem:[#allocation8 + $0x84] sm:$0xff]
    %v2218 = vld [vmem:[#allocation8 + $0x8c] sm:$0xf]
    %v2219 = vld [vmem:[#allocation8 + $0x90] sm:$0xff]
    %v2220 = vld [vmem:[#allocation8 + $0x98] sm:$0xf]
    %v2221 = vld [vmem:[#allocation8 + $0x9c] sm:$0xff]
    %v2222 = vld [vmem:[#allocation8 + $0xa4] sm:$0xf]
    %v2223 = vld [vmem:[#allocation8 + $0xa8] sm:$0xff]
    %v2224 = vld [vmem:[#allocation8 + $0xb0] sm:$0xf]
    %v2225 = vld [vmem:[#allocation8 + $0xb4] sm:$0xff]
    %v2226 = vld [vmem:[#allocation8 + $0xbc] sm:$0xf]
    %v2259 = vunpack.c.l.b16 %v2195
    %v2260 = vunpack.c.h.b16 %v2195
    %v2261 = vunpack.c.l.b16 %v2196
    %v2262 = vunpack.c.l.b16 %v2197
    %v2263 = vunpack.c.h.b16 %v2197
    %v2264 = vunpack.c.l.b16 %v2198
    %v2265 = vunpack.c.l.b16 %v2199
    %v2266 = vunpack.c.h.b16 %v2199
    %v2267 = vunpack.c.l.b16 %v2200
    %v2268 = vunpack.c.l.b16 %v2201
    %v2269 = vunpack.c.h.b16 %v2201
    %v2270 = vunpack.c.l.b16 %v2202
    %v2271 = vunpack.c.l.b16 %v2203
    %v2272 = vunpack.c.h.b16 %v2203
    %v2273 = vunpack.c.l.b16 %v2204
    %v2274 = vunpack.c.l.b16 %v2205
    %v2275 = vunpack.c.h.b16 %v2205
    %v2276 = vunpack.c.l.b16 %v2206
    %v2277 = vunpack.c.l.b16 %v2207
    %v2278 = vunpack.c.h.b16 %v2207
    %v2279 = vunpack.c.l.b16 %v2208
    %v2280 = vunpack.c.l.b16 %v2209
    %v2281 = vunpack.c.h.b16 %v2209
    %v2282 = vunpack.c.l.b16 %v2210
    %v2283 = vunpack.c.l.b16 %v2211
    %v2284 = vunpack.c.h.b16 %v2211
    %v2285 = vunpack.c.l.b16 %v2212
    %v2286 = vunpack.c.l.b16 %v2213
    %v2287 = vunpack.c.h.b16 %v2213
    %v2288 = vunpack.c.l.b16 %v2214
    %v2289 = vunpack.c.l.b16 %v2215
    %v2290 = vunpack.c.h.b16 %v2215
    %v2291 = vunpack.c.l.b16 %v2216
    %v2292 = vunpack.c.l.b16 %v2217
    %v2293 = vunpack.c.h.b16 %v2217
    %v2294 = vunpack.c.l.b16 %v2218
    %v2295 = vunpack.c.l.b16 %v2219
    %v2296 = vunpack.c.h.b16 %v2219
    %v2297 = vunpack.c.l.b16 %v2220
    %v2298 = vunpack.c.l.b16 %v2221
    %v2299 = vunpack.c.h.b16 %v2221
    %v2300 = vunpack.c.l.b16 %v2222
    %v2301 = vunpack.c.l.b16 %v2223
    %v2302 = vunpack.c.h.b16 %v2223
    %v2303 = vunpack.c.l.b16 %v2224
    %v2304 = vunpack.c.l.b16 %v2225
    %v2305 = vunpack.c.h.b16 %v2225
    %v2306 = vunpack.c.l.b16 %v2226
    %v2307 = vpack.c.b16 %v2262, %v2259
    %v2308 = vpack.c.b16 %v2263, %v2260
    %v2309 = vpack.c.b16 %v2264, %v2261
    %v2310 = vpack.c.b16 %v2268, %v2265
    %v2311 = vpack.c.b16 %v2269, %v2266
    %v2312 = vpack.c.b16 %v2270, %v2267
    %v2313 = vpack.c.b16 %v2274, %v2271
    %v2314 = vpack.c.b16 %v2275, %v2272
    %v2315 = vpack.c.b16 %v2276, %v2273
    %v2316 = vpack.c.b16 %v2280, %v2277
    %v2317 = vpack.c.b16 %v2281, %v2278
    %v2318 = vpack.c.b16 %v2282, %v2279
    %v2319 = vpack.c.b16 %v2286, %v2283
    %v2320 = vpack.c.b16 %v2287, %v2284
    %v2321 = vpack.c.b16 %v2288, %v2285
    %v2322 = vpack.c.b16 %v2292, %v2289
    %v2323 = vpack.c.b16 %v2293, %v2290
    %v2324 = vpack.c.b16 %v2294, %v2291
    %v2325 = vpack.c.b16 %v2298, %v2295
    %v2326 = vpack.c.b16 %v2299, %v2296
    %v2327 = vpack.c.b16 %v2300, %v2297
    %v2328 = vpack.c.b16 %v2304, %v2301
    %v2329 = vpack.c.b16 %v2305, %v2302
    %v2330 = vpack.c.b16 %v2306, %v2303
    %2355 = vmatpush.bf16.msra.mxu0 %v2328
    %2356 = vmatpush.bf16.msra.mxu0 %v2325
    %2357 = vmatpush.bf16.msra.mxu0 %v2322
    %2358 = vmatpush.bf16.msra.mxu0 %v2319
    %2359 = vmatpush.bf16.msra.mxu0 %v2316
    %2360 = vmatpush.bf16.msra.mxu0 %v2313
    %2361 = vmatpush.bf16.msra.mxu0 %v2310
    %2362 = vmatpush.bf16.msra.mxu0 %v2307
    %2363 = vmatmul.bf16.gmra.mxu0 %v2194
    %v2364 = vpop.f32.mrf.mxu0
    %v2365 = vadd.f32 %v437, %v2364
    %v2366 = vpop.f32.mrf.mxu0
    %2367 = vdwg.mxu0
    %2368 = vmatpush.bf16.msra.mxu0 %v2329
    %2369 = vmatpush.bf16.msra.mxu0 %v2326
    %2370 = vmatpush.bf16.msra.mxu0 %v2323
    %2371 = vmatpush.bf16.msra.mxu0 %v2320
    %2372 = vmatpush.bf16.msra.mxu0 %v2317
    %2373 = vmatpush.bf16.msra.mxu0 %v2314
    %2374 = vmatpush.bf16.msra.mxu0 %v2311
    %2375 = vmatpush.bf16.msra.mxu0 %v2308
    %2376 = vmatmul.bf16.gmra.mxu0 %v2194
    %v2377 = vpop.f32.mrf.mxu0
    %v2378 = vadd.f32 %v438, %v2377
    %v2379 = vpop.f32.mrf.mxu0
    %2380 = vdwg.mxu0
    %2381 = vmatpush.bf16.msra.mxu0 %v2330
    %2382 = vmatpush.bf16.msra.mxu0 %v2327
    %2383 = vmatpush.bf16.msra.mxu0 %v2324
    %2384 = vmatpush.bf16.msra.mxu0 %v2321
    %2385 = vmatpush.bf16.msra.mxu0 %v2318
    %2386 = vmatpush.bf16.msra.mxu0 %v2315
    %2387 = vmatpush.bf16.msra.mxu0 %v2312
    %2388 = vmatpush.bf16.msra.mxu0 %v2309
    %2389 = vmatmul.bf16.gmra.mxu0 %v2194
    %v2390 = vpop.f32.mrf.mxu0
    %v2391 = vadd.f32 %v439, %v2390
    %v2392 = vpop.f32.mrf.mxu0
    %2393 = vdwg.mxu0
    %v2394 = vadd.f32 %v2191, %v2365
    %v2395 = vxor.u32 %v2394, 2147483648
    %v2396 = vmul.f32 %v2395, 1.442695
    %v2397 = vpow.pop %v2396
    %v2398 = vadd.f32 %v2397, 1.0
    %v2399 = vrcp.pop %v2398
    %v2400 = vmul.f32 %v2398, %v2399
    %v2401 = vsub.f32 1.0, %v2400
    %v2402 = vmul.f32 %v2399, %v2401
    %v2403 = vadd.f32 %v2399, %v2402
    %vm2404 = vweird.f32 %v2398
    %vm2405 = vweird.f32 %v2399
    %vm2406 = vmor %vm2404, %vm2405
    %v2407 = vsel %vm2406, %v2399, %v2403
    %v2408 = vand.u32 2147483647, %v2398
    %vm2409 = vcmp.eq.f32.partialorder %v2408, 8.507059e+37
    %v2410 = vand.u32 %v2398, 2147483648
    %v2411 = vor.u32 1.1754944e-38, %v2410
    %v2412 = vsel %vm2409, %v2411, %v2407
    %v2413 = vmul.f32 1.0, %v2412
    %v2414 = vadd.f32 %v2192, %v2378
    %v2415 = vxor.u32 %v2414, 2147483648
    %v2416 = vmul.f32 %v2415, 1.442695
    %v2417 = vpow.pop %v2416
    %v2418 = vadd.f32 %v2417, 1.0
    %v2419 = vrcp.pop %v2418
    %v2420 = vmul.f32 %v2418, %v2419
    %v2421 = vsub.f32 1.0, %v2420
    %v2422 = vmul.f32 %v2419, %v2421
    %v2423 = vadd.f32 %v2419, %v2422
    %vm2424 = vweird.f32 %v2418
    %vm2425 = vweird.f32 %v2419
    %vm2426 = vmor %vm2424, %vm2425
    %v2427 = vsel %vm2426, %v2419, %v2423
    %v2428 = vand.u32 2147483647, %v2418
    %vm2429 = vcmp.eq.f32.partialorder %v2428, 8.507059e+37
    %v2430 = vand.u32 %v2418, 2147483648
    %v2431 = vor.u32 1.1754944e-38, %v2430
    %v2432 = vsel %vm2429, %v2431, %v2427
    %v2433 = vmul.f32 1.0, %v2432
    %v2434 = vmul.f32 %v2413, %v2391
    %v2435 = vadd.f32 %v2193, %v2434
    %v2436 = vtanh.pop %v2435
    %v2437 = vsub.f32 1.0, %v2433
    %v2438 = vmul.f32 %v2437, %v2436
    %v2439 = vmul.f32 %v2433, %v2185
    %v2440 = vadd.f32 %v2438, %v2439
    %s2441 = scalar_lea.vmem [#allocation11], 56
    %2442 = vst [vmem:[%s2441] sm:$0xff] %v2440
    %2443 = vst [vmem:[#allocation12] sm:$0xff] %v2440
    // Predicated region
    $region38: #{tpu_custom_call.1} parent=1 // pred_check
      _
    $region39: #{tpu_custom_call.1} parent=1 // pred_check_branch
      %2445 = sbr.rel (0) target = $region41
    $region40: #{tpu_custom_call.1} parent=1 // pred_region
      %2447 = vsyncadd [#allocation5], 0
      %s2448 = sshll.u32 [#allocation11], 4
      %s2449 = int_to_ptr.vmem [resolvable:$true] %s2448
      %s2450 = sshll.u32 %s5, 4
      %s2451 = int_to_ptr.hbm [resolvable:$true] %s2450
      %2456 = dma.vmem_to_hbm [thread:$0]  %s2449, 1024, %s2451, [#allocation5], 128, 128, 8
    $region41: #{tpu_custom_call.1} parent=1 // pred_fallthru
      _
    // Predicated region
    $region42: #{tpu_custom_call.1} parent=1 // pred_check
      _
    $region43: #{tpu_custom_call.1} parent=1 // pred_check_branch
      %2458 = sbr.rel (0) target = $region45
    $region44: #{tpu_custom_call.1} parent=1 // pred_region
      %2460 = vsyncadd [#allocation13], 0
      %s2462 = sshll.u32 [#allocation12], 4
      %s2463 = int_to_ptr.vmem [resolvable:$true] %s2462
      %s2464 = sshll.u32 %s6, 4
      %s2465 = int_to_ptr.hbm [resolvable:$true] %s2464
      %2467 = dma.vmem_to_hbm [thread:$0]  %s2463, 128, %s2465, [#allocation13]
    $region45: #{tpu_custom_call.1} parent=1 // pred_fallthru
      _
    // Predicated region
    $region46: #{tpu_custom_call.1} parent=1 // pred_check
      _
    $region47: #{tpu_custom_call.1} parent=1 // pred_check_branch
      %2469 = sbr.rel (0) target = $region49
    $region48: #{tpu_custom_call.1} parent=1 // pred_region
      %2471 = dma.done [#allocation5], 1024
    $region49: #{tpu_custom_call.1} parent=1 // pred_fallthru
      _
    // Predicated region
    $region50: #{tpu_custom_call.1} parent=1 // pred_check
      _
    $region51: #{tpu_custom_call.1} parent=1 // pred_check_branch
      %2473 = sbr.rel (0) target = $region53
    $region52: #{tpu_custom_call.1} parent=1 // pred_region
      %2475 = dma.done [#allocation13], 128
    $region53: #{tpu_custom_call.1} parent=1 // pred_fallthru
      _
    %2476 = vsyncpa [#allocation4], 1
    %2477 = vsyncpa [#allocation7], 1
    %2478 = vsyncpa [#allocation10], 1
    %2479 = vsyncpa [#allocation5], 1
    %2480 = vsyncpa [#allocation13], 1

</llo_original>
